<compile_context>
chip_gen: v5e
topology: v5e:2x2
jax: 0.10.0
libtpu: 0.0.40
codegen_flags: <defaults>
</compile_context>

<pallas_src>
import functools

import jax
import jax.numpy as jnp
from jax.experimental import pallas as pl
from jax.experimental.pallas import tpu as pltpu


# ----------------------------------------------------------------------------- #
# Fused encoder-layer kernel (one grid step = one batch block x one layer)
# ----------------------------------------------------------------------------- #
def _layernorm(y, gamma, beta, eps):
    """LayerNorm over the last axis (biased variance, like PyTorch)."""
    mean = jnp.mean(y, axis=-1, keepdims=True)
    cen = y - mean
    var = jnp.mean(cen * cen, axis=-1, keepdims=True)
    return cen * jax.lax.rsqrt(var + eps) * gamma + beta


def _encoder_layer_kernel(
    x_ref,                                   # (S, E) f32   input embeddings
    wqkv_ref, bqkv_ref,                      # (1, E, 3E) bf16, (1, 1, 3E) f32
    wo_ref, bo_ref,                          # (1, E, E) bf16,  (1, 1, E) f32
    w1_ref, b1_ref,                          # (1, E, FF) bf16, (1, 1, FF) f32
    w2_ref, b2_ref,                          # (1, FF, E) bf16, (1, 1, E) f32
    g1_ref, be1_ref, g2_ref, be2_ref,        # (1, 1, E) f32 each
    o_ref,                                   # (S, E) f32   residual stream (resident)
    *, num_heads, eps,
):
    layer = pl.program_id(1)

    # First layer for this batch block: seed the residual stream from the input.
    @pl.when(layer == 0)
    def _():
        o_ref[...] = x_ref[...]

    x = o_ref[...]                            # (S, E) f32, current residual stream
    S, E = x.shape
    H = num_heads
    Dh = E // H
    scale = float(Dh) ** -0.5

    x_bf = x.astype(jnp.bfloat16)

    # ---- QKV projection (single lane-dense (S, 3E) GEMM) --------------------
    qkv = jnp.dot(x_bf, wqkv_ref[0], preferred_element_type=jnp.float32)
    qkv = qkv + bqkv_ref[0]                   # (S, 3E) f32
    q = qkv[:, :E]
    k = qkv[:, E:2 * E]
    v = qkv[:, 2 * E:]

    # ---- per-head attention (static 32-lane head slices, no transposes) -----
    heads = []
    for h in range(H):
        sl = slice(h * Dh, (h + 1) * Dh)
        qh = (q[:, sl] * scale).astype(jnp.bfloat16)   # (S, Dh), scale folded into Q
        kh = k[:, sl].astype(jnp.bfloat16)             # (S, Dh)
        s = jnp.einsum("sd,td->st", qh, kh,
                       preferred_element_type=jnp.float32)           # (S, S)
        s = s - jnp.max(s, axis=-1, keepdims=True)
        p = jnp.exp(s)
        p = p * pl.reciprocal(jnp.sum(p, axis=-1, keepdims=True), approx=True)
        oh = jnp.dot(p, v[:, sl], preferred_element_type=jnp.float32)  # (S, Dh)
        heads.append(oh)
    attn = jnp.concatenate(heads, axis=-1)    # (S, E) f32, lane-dense assembly

    # ---- out_proj + residual + LayerNorm1 (fused epilogue) -------------------
    proj = jnp.dot(attn.astype(jnp.bfloat16), wo_ref[0],
                   preferred_element_type=jnp.float32) + bo_ref[0]
    y = _layernorm(x + proj, g1_ref[0], be1_ref[0], eps)

    # ---- feed-forward + residual + LayerNorm2 --------------------------------
    h1 = jnp.dot(y.astype(jnp.bfloat16), w1_ref[0],
                 preferred_element_type=jnp.float32) + b1_ref[0]      # (S, FF)
    h1 = jnp.maximum(h1, 0.0)
    h2 = jnp.dot(h1.astype(jnp.bfloat16), w2_ref[0],
                 preferred_element_type=jnp.float32) + b2_ref[0]      # (S, E)
    z = _layernorm(y + h2, g2_ref[0], be2_ref[0], eps)

    o_ref[...] = z.astype(o_ref.dtype)


# ----------------------------------------------------------------------------- #
# pallas_call wrapper: whole encoder stack in one launch
# ----------------------------------------------------------------------------- #
def encoder_stack(x2, params, *, num_heads, batch, seq):
    """x2: (B*S, E) f32, batch-major rows (row = b*S + s). Returns (B*S, E) f32."""
    N, E = x2.shape
    L, _, threeE = params["wqkv"].shape
    FF = params["w1"].shape[2]
    S = seq

    kernel = functools.partial(_encoder_layer_kernel,
                               num_heads=num_heads, eps=1e-5)

    def row_map(b, l):      # activation / output blocks follow the batch axis
        return (b, 0)

    def layer_map(b, l):    # weight blocks follow the layer axis
        return (l, 0, 0)

    grid_spec = pltpu.PrefetchScalarGridSpec(
        num_scalar_prefetch=0,
        grid=(batch, L),
        in_specs=[
            pl.BlockSpec((S, E), row_map),              # x
            pl.BlockSpec((1, E, threeE), layer_map),    # wqkv
            pl.BlockSpec((1, 1, threeE), layer_map),    # bqkv
            pl.BlockSpec((1, E, E), layer_map),         # wo
            pl.BlockSpec((1, 1, E), layer_map),         # bo
            pl.BlockSpec((1, E, FF), layer_map),        # w1
            pl.BlockSpec((1, 1, FF), layer_map),        # b1
            pl.BlockSpec((1, FF, E), layer_map),        # w2
            pl.BlockSpec((1, 1, E), layer_map),         # b2
            pl.BlockSpec((1, 1, E), layer_map),         # norm1 gamma
            pl.BlockSpec((1, 1, E), layer_map),         # norm1 beta
            pl.BlockSpec((1, 1, E), layer_map),         # norm2 gamma
            pl.BlockSpec((1, 1, E), layer_map),         # norm2 beta
        ],
        out_specs=pl.BlockSpec((S, E), row_map),
        scratch_shapes=[],
    )

    return pl.pallas_call(
        kernel,
        out_shape=jax.ShapeDtypeStruct((N, E), jnp.float32),
        grid_spec=grid_spec,
        compiler_params=pltpu.CompilerParams(
            dimension_semantics=("parallel", "arbitrary"),
            vmem_limit_bytes=64 * 1024 * 1024),
    )(x2,
      params["wqkv"], params["bqkv"], params["wo"], params["bo"],
      params["w1"], params["b1"], params["w2"], params["b2"],
      params["g1"], params["be1"], params["g2"], params["be2"])


# ----------------------------------------------------------------------------- #
# Parameter construction (deterministic, synthetic; weights pre-transposed and
# stacked across layers, matmul weights stored as bf16)
# ----------------------------------------------------------------------------- #
def init_params(key, embedding_dim=128, num_heads=4, num_layers=3,
                dim_feedforward=1024, max_len=500):
    E, FF, L = embedding_dim, dim_feedforward, num_layers
    keys = jax.random.split(key, L * 8 + 1)
    s = 0.05
    pos = jax.random.uniform(keys[0], (max_len, E), jnp.float32)

    wqkv, bqkv, wo, bo = [], [], [], []
    w1, b1, w2, b2 = [], [], [], []
    g1, be1, g2, be2 = [], [], [], []
    for l in range(L):
        k = keys[1 + l * 8: 1 + (l + 1) * 8]
        wqkv.append((jax.random.normal(k[0], (3 * E, E), jnp.float32) * s).T)  # (E, 3E)
        bqkv.append(jax.random.normal(k[1], (3 * E,), jnp.float32) * s)
        wo.append((jax.random.normal(k[2], (E, E), jnp.float32) * s).T)        # (E, E)
        bo.append(jax.random.normal(k[3], (E,), jnp.float32) * s)
        w1.append((jax.random.normal(k[4], (FF, E), jnp.float32) * s).T)       # (E, FF)
        b1.append(jax.random.normal(k[5], (FF,), jnp.float32) * s)
        w2.append((jax.random.normal(k[6], (E, FF), jnp.float32) * s).T)       # (FF, E)
        b2.append(jax.random.normal(k[7], (E,), jnp.float32) * s)
        g1.append(jnp.ones((E,), jnp.float32))
        be1.append(jnp.zeros((E,), jnp.float32))
        g2.append(jnp.ones((E,), jnp.float32))
        be2.append(jnp.zeros((E,), jnp.float32))

    stack = lambda xs: jnp.stack(xs, axis=0)
    return {
        "pos": pos,
        "wqkv": stack(wqkv).astype(jnp.bfloat16),             # (L, E, 3E)
        "bqkv": stack(bqkv).reshape(L, 1, 3 * E),
        "wo": stack(wo).astype(jnp.bfloat16),                  # (L, E, E)
        "bo": stack(bo).reshape(L, 1, E),
        "w1": stack(w1).astype(jnp.bfloat16),                  # (L, E, FF)
        "b1": stack(b1).reshape(L, 1, FF),
        "w2": stack(w2).astype(jnp.bfloat16),                  # (L, FF, E)
        "b2": stack(b2).reshape(L, 1, E),
        "g1": stack(g1).reshape(L, 1, E),
        "be1": stack(be1).reshape(L, 1, E),
        "g2": stack(g2).reshape(L, 1, E),
        "be2": stack(be2).reshape(L, 1, E),
    }


# ----------------------------------------------------------------------------- #
# Forward pass (num_heads is a STATIC arg — not traced through the params dict)
# ----------------------------------------------------------------------------- #
@functools.partial(jax.jit, static_argnames=("num_heads",))
def transformer_encoder_forward(x_bes, params, *, num_heads=4):
    """x_bes: (B, E, S) -> output (S, B, E), matching the PyTorch module."""
    B, E, S = x_bes.shape
    pos = params["pos"][:S, :]                                   # (S, E)
    emb_sbe = jnp.transpose(x_bes, (2, 0, 1)) + pos[:, None, :]  # (S, B, E)
    # Batch-major flattening (row = b*S + s) so each batch is a contiguous block.
    x2 = jnp.transpose(emb_sbe, (1, 0, 2)).reshape(B * S, E)
    out2 = encoder_stack(x2, params, num_heads=num_heads, batch=B, seq=S)
    return out2.reshape(B, S, E).transpose(1, 0, 2)              # (S, B, E)


# ----------------------------------------------------------------------------- #
if __name__ == "__main__":
    B, E, S = 2, 128, 8          # batch, embedding_dim, sequence length
    key = jax.random.PRNGKey(0)
    kx, kp = jax.random.split(key)

    x = jax.random.normal(kx, (B, E, S), jnp.float32)
    params = init_params(kp, embedding_dim=E, num_heads=4, num_layers=3)

    out = transformer_encoder_forward(x, params, num_heads=4)
    jax.block_until_ready(out)
    assert out.shape == (S, B, E), out.shape
    assert bool(jnp.all(jnp.isfinite(out)))
    print("KERNEL_OK")
</pallas_src>

<mosaic_0001>
module attributes {stable_mosaic.version = 11 : i64} {
  func.func @_encoder_layer_kernel(%arg0: i32, %arg1: i32, %arg2: memref<8x128xf32, #tpu.memory_space<vmem>>, %arg3: memref<1x128x384xbf16, #tpu.memory_space<vmem>>, %arg4: memref<1x1x384xf32, #tpu.memory_space<vmem>>, %arg5: memref<1x128x128xbf16, #tpu.memory_space<vmem>>, %arg6: memref<1x1x128xf32, #tpu.memory_space<vmem>>, %arg7: memref<1x128x1024xbf16, #tpu.memory_space<vmem>>, %arg8: memref<1x1x1024xf32, #tpu.memory_space<vmem>>, %arg9: memref<1x1024x128xbf16, #tpu.memory_space<vmem>>, %arg10: memref<1x1x128xf32, #tpu.memory_space<vmem>>, %arg11: memref<1x1x128xf32, #tpu.memory_space<vmem>>, %arg12: memref<1x1x128xf32, #tpu.memory_space<vmem>>, %arg13: memref<1x1x128xf32, #tpu.memory_space<vmem>>, %arg14: memref<1x1x128xf32, #tpu.memory_space<vmem>>, %arg15: memref<8x128xf32, #tpu.memory_space<vmem>>) attributes {dimension_semantics = [#tpu.dimension_semantics<parallel>, #tpu.dimension_semantics<arbitrary>], iteration_bounds = array<i64: 2, 3>, scalar_prefetch = 0 : i64, scratch_operands = 0 : i64, tpu.core_type = #tpu.core_type<tc>, window_params = [{transform_indices = @transform_0, window_bounds = array<i64: 8, 128>}, {transform_indices = @transform_1, window_bounds = array<i64: 1, 128, 384>}, {transform_indices = @transform_2, window_bounds = array<i64: 1, 1, 384>}, {transform_indices = @transform_3, window_bounds = array<i64: 1, 128, 128>}, {transform_indices = @transform_4, window_bounds = array<i64: 1, 1, 128>}, {transform_indices = @transform_5, window_bounds = array<i64: 1, 128, 1024>}, {transform_indices = @transform_6, window_bounds = array<i64: 1, 1, 1024>}, {transform_indices = @transform_7, window_bounds = array<i64: 1, 1024, 128>}, {transform_indices = @transform_8, window_bounds = array<i64: 1, 1, 128>}, {transform_indices = @transform_9, window_bounds = array<i64: 1, 1, 128>}, {transform_indices = @transform_10, window_bounds = array<i64: 1, 1, 128>}, {transform_indices = @transform_11, window_bounds = array<i64: 1, 1, 128>}, {transform_indices = @transform_12, window_bounds = array<i64: 1, 1, 128>}, {transform_indices = @transform_13, window_bounds = array<i64: 8, 128>}]} {
    %c0_i32 = arith.constant 0 : i32
    %0 = arith.cmpi eq, %arg1, %c0_i32 : i32
    %1 = arith.extui %0 : i1 to i32
    %c0_i32_0 = arith.constant 0 : i32
    %2 = arith.cmpi ne, %1, %c0_i32_0 : i32
    scf.if %2 {
      %c0_74 = arith.constant 0 : index
      %c0_75 = arith.constant 0 : index
      %169 = vector.load %arg2[%c0_74, %c0_75] : memref<8x128xf32, #tpu.memory_space<vmem>>, vector<8x128xf32>
      %c0_76 = arith.constant 0 : index
      %c0_77 = arith.constant 0 : index
      %170 = vector.load %arg15[%c0_76, %c0_77] : memref<8x128xf32, #tpu.memory_space<vmem>>, vector<8x128xf32>
      tpu.vector_store %arg15[%c0_76, %c0_77], %169 {strides = array<i32>} : memref<8x128xf32, #tpu.memory_space<vmem>>, vector<8x128xf32>,
    } else {
    }
    %c0 = arith.constant 0 : index
    %c0_1 = arith.constant 0 : index
    %3 = vector.load %arg15[%c0, %c0_1] : memref<8x128xf32, #tpu.memory_space<vmem>>, vector<8x128xf32>
    %4 = arith.truncf %3 : vector<8x128xf32> to vector<8x128xbf16>
    %c0_2 = arith.constant 0 : index
    %c0_3 = arith.constant 0 : index
    %c0_4 = arith.constant 0 : index
    %5 = vector.load %arg3[%c0_2, %c0_3, %c0_4] : memref<1x128x384xbf16, #tpu.memory_space<vmem>>, vector<1x128x384xbf16>
    %6 = vector.shape_cast %5 : vector<1x128x384xbf16> to vector<128x384xbf16>
    %cst = arith.constant dense<0.000000e+00> : vector<8x384xf32>
    %7 = tpu.matmul %4, %6, %cst {dimension_numbers = #tpu.dot_dimension_numbers<[1], [0], [0], [1], [0, 0, 1, 1], [], []>} : vector<8x128xbf16>, vector<128x384xbf16>, vector<8x384xf32> -> vector<8x384xf32>
    %c0_5 = arith.constant 0 : index
    %c0_6 = arith.constant 0 : index
    %c0_7 = arith.constant 0 : index
    %8 = vector.load %arg4[%c0_5, %c0_6, %c0_7] : memref<1x1x384xf32, #tpu.memory_space<vmem>>, vector<1x1x384xf32>
    %9 = vector.shape_cast %8 : vector<1x1x384xf32> to vector<1x384xf32>
    %10 = vector.broadcast %9 : vector<1x384xf32> to vector<8x384xf32>
    %11 = arith.addf %7, %10 : vector<8x384xf32>
    %12 = vector.extract_strided_slice %11 {offsets = [0, 0], sizes = [8, 128], strides = [1, 1]} : vector<8x384xf32> to vector<8x128xf32>
    %13 = vector.extract_strided_slice %11 {offsets = [0, 128], sizes = [8, 128], strides = [1, 1]} : vector<8x384xf32> to vector<8x128xf32>
    %14 = vector.extract_strided_slice %11 {offsets = [0, 256], sizes = [8, 128], strides = [1, 1]} : vector<8x384xf32> to vector<8x128xf32>
    %15 = vector.extract_strided_slice %12 {offsets = [0, 0], sizes = [8, 32], strides = [1, 1]} : vector<8x128xf32> to vector<8x32xf32>
    %cst_8 = arith.constant 0.176776692 : f32
    %16 = vector.broadcast %cst_8 : f32 to vector<8x32xf32>
    %17 = arith.mulf %15, %16 : vector<8x32xf32>
    %18 = arith.truncf %17 : vector<8x32xf32> to vector<8x32xbf16>
    %19 = vector.extract_strided_slice %13 {offsets = [0, 0], sizes = [8, 32], strides = [1, 1]} : vector<8x128xf32> to vector<8x32xf32>
    %20 = arith.truncf %19 : vector<8x32xf32> to vector<8x32xbf16>
    "tpu.trace_start"() <{level = 10 : i32, message = "sd,td->st"}> : () -> ()
    %cst_9 = arith.constant dense<0.000000e+00> : vector<8x8xf32>
    %21 = tpu.matmul %18, %20, %cst_9 {dimension_numbers = #tpu.dot_dimension_numbers<[1], [1], [0], [0], [0, 0, 1, 0], [], []>} : vector<8x32xbf16>, vector<8x32xbf16>, vector<8x8xf32> -> vector<8x8xf32>
    "tpu.trace_stop"() : () -> ()
    %cst_10 = arith.constant dense<0xFF800000> : vector<8xf32>
    %22 = vector.multi_reduction <maximumf>, %21, %cst_10 [1] : vector<8x8xf32> to vector<8xf32>
    %23 = vector.shape_cast %22 : vector<8xf32> to vector<8x1xf32>
    %24 = vector.broadcast %23 : vector<8x1xf32> to vector<8x8xf32>
    %25 = arith.subf %21, %24 : vector<8x8xf32>
    %26 = math.exp %25 : vector<8x8xf32>
    %cst_11 = arith.constant dense<0.000000e+00> : vector<8xf32>
    %27 = vector.multi_reduction <add>, %26, %cst_11 [1] : vector<8x8xf32> to vector<8xf32>
    %28 = vector.shape_cast %27 : vector<8xf32> to vector<8x1xf32>
    %29 = tpu.reciprocal %28 {approx = true} : vector<8x1xf32> -> vector<8x1xf32>
    %30 = vector.broadcast %29 : vector<8x1xf32> to vector<8x8xf32>
    %31 = arith.mulf %26, %30 : vector<8x8xf32>
    %32 = vector.extract_strided_slice %14 {offsets = [0, 0], sizes = [8, 32], strides = [1, 1]} : vector<8x128xf32> to vector<8x32xf32>
    %cst_12 = arith.constant dense<0.000000e+00> : vector<8x32xf32>
    %33 = tpu.matmul %31, %32, %cst_12 {dimension_numbers = #tpu.dot_dimension_numbers<[1], [0], [0], [1], [0, 0, 1, 1], [], []>} : vector<8x8xf32>, vector<8x32xf32>, vector<8x32xf32> -> vector<8x32xf32>
    %34 = vector.extract_strided_slice %12 {offsets = [0, 32], sizes = [8, 32], strides = [1, 1]} : vector<8x128xf32> to vector<8x32xf32>
    %cst_13 = arith.constant 0.176776692 : f32
    %35 = vector.broadcast %cst_13 : f32 to vector<8x32xf32>
    %36 = arith.mulf %34, %35 : vector<8x32xf32>
    %37 = arith.truncf %36 : vector<8x32xf32> to vector<8x32xbf16>
    %38 = vector.extract_strided_slice %13 {offsets = [0, 32], sizes = [8, 32], strides = [1, 1]} : vector<8x128xf32> to vector<8x32xf32>
    %39 = arith.truncf %38 : vector<8x32xf32> to vector<8x32xbf16>
    "tpu.trace_start"() <{level = 10 : i32, message = "sd,td->st"}> : () -> ()
    %cst_14 = arith.constant dense<0.000000e+00> : vector<8x8xf32>
    %40 = tpu.matmul %37, %39, %cst_14 {dimension_numbers = #tpu.dot_dimension_numbers<[1], [1], [0], [0], [0, 0, 1, 0], [], []>} : vector<8x32xbf16>, vector<8x32xbf16>, vector<8x8xf32> -> vector<8x8xf32>
    "tpu.trace_stop"() : () -> ()
    %cst_15 = arith.constant dense<0xFF800000> : vector<8xf32>
    %41 = vector.multi_reduction <maximumf>, %40, %cst_15 [1] : vector<8x8xf32> to vector<8xf32>
    %42 = vector.shape_cast %41 : vector<8xf32> to vector<8x1xf32>
    %43 = vector.broadcast %42 : vector<8x1xf32> to vector<8x8xf32>
    %44 = arith.subf %40, %43 : vector<8x8xf32>
    %45 = math.exp %44 : vector<8x8xf32>
    %cst_16 = arith.constant dense<0.000000e+00> : vector<8xf32>
    %46 = vector.multi_reduction <add>, %45, %cst_16 [1] : vector<8x8xf32> to vector<8xf32>
    %47 = vector.shape_cast %46 : vector<8xf32> to vector<8x1xf32>
    %48 = tpu.reciprocal %47 {approx = true} : vector<8x1xf32> -> vector<8x1xf32>
    %49 = vector.broadcast %48 : vector<8x1xf32> to vector<8x8xf32>
    %50 = arith.mulf %45, %49 : vector<8x8xf32>
    %51 = vector.extract_strided_slice %14 {offsets = [0, 32], sizes = [8, 32], strides = [1, 1]} : vector<8x128xf32> to vector<8x32xf32>
    %cst_17 = arith.constant dense<0.000000e+00> : vector<8x32xf32>
    %52 = tpu.matmul %50, %51, %cst_17 {dimension_numbers = #tpu.dot_dimension_numbers<[1], [0], [0], [1], [0, 0, 1, 1], [], []>} : vector<8x8xf32>, vector<8x32xf32>, vector<8x32xf32> -> vector<8x32xf32>
    %53 = vector.extract_strided_slice %12 {offsets = [0, 64], sizes = [8, 32], strides = [1, 1]} : vector<8x128xf32> to vector<8x32xf32>
    %cst_18 = arith.constant 0.176776692 : f32
    %54 = vector.broadcast %cst_18 : f32 to vector<8x32xf32>
    %55 = arith.mulf %53, %54 : vector<8x32xf32>
    %56 = arith.truncf %55 : vector<8x32xf32> to vector<8x32xbf16>
    %57 = vector.extract_strided_slice %13 {offsets = [0, 64], sizes = [8, 32], strides = [1, 1]} : vector<8x128xf32> to vector<8x32xf32>
    %58 = arith.truncf %57 : vector<8x32xf32> to vector<8x32xbf16>
    "tpu.trace_start"() <{level = 10 : i32, message = "sd,td->st"}> : () -> ()
    %cst_19 = arith.constant dense<0.000000e+00> : vector<8x8xf32>
    %59 = tpu.matmul %56, %58, %cst_19 {dimension_numbers = #tpu.dot_dimension_numbers<[1], [1], [0], [0], [0, 0, 1, 0], [], []>} : vector<8x32xbf16>, vector<8x32xbf16>, vector<8x8xf32> -> vector<8x8xf32>
    "tpu.trace_stop"() : () -> ()
    %cst_20 = arith.constant dense<0xFF800000> : vector<8xf32>
    %60 = vector.multi_reduction <maximumf>, %59, %cst_20 [1] : vector<8x8xf32> to vector<8xf32>
    %61 = vector.shape_cast %60 : vector<8xf32> to vector<8x1xf32>
    %62 = vector.broadcast %61 : vector<8x1xf32> to vector<8x8xf32>
    %63 = arith.subf %59, %62 : vector<8x8xf32>
    %64 = math.exp %63 : vector<8x8xf32>
    %cst_21 = arith.constant dense<0.000000e+00> : vector<8xf32>
    %65 = vector.multi_reduction <add>, %64, %cst_21 [1] : vector<8x8xf32> to vector<8xf32>
    %66 = vector.shape_cast %65 : vector<8xf32> to vector<8x1xf32>
    %67 = tpu.reciprocal %66 {approx = true} : vector<8x1xf32> -> vector<8x1xf32>
    %68 = vector.broadcast %67 : vector<8x1xf32> to vector<8x8xf32>
    %69 = arith.mulf %64, %68 : vector<8x8xf32>
    %70 = vector.extract_strided_slice %14 {offsets = [0, 64], sizes = [8, 32], strides = [1, 1]} : vector<8x128xf32> to vector<8x32xf32>
    %cst_22 = arith.constant dense<0.000000e+00> : vector<8x32xf32>
    %71 = tpu.matmul %69, %70, %cst_22 {dimension_numbers = #tpu.dot_dimension_numbers<[1], [0], [0], [1], [0, 0, 1, 1], [], []>} : vector<8x8xf32>, vector<8x32xf32>, vector<8x32xf32> -> vector<8x32xf32>
    %72 = vector.extract_strided_slice %12 {offsets = [0, 96], sizes = [8, 32], strides = [1, 1]} : vector<8x128xf32> to vector<8x32xf32>
    %cst_23 = arith.constant 0.176776692 : f32
    %73 = vector.broadcast %cst_23 : f32 to vector<8x32xf32>
    %74 = arith.mulf %72, %73 : vector<8x32xf32>
    %75 = arith.truncf %74 : vector<8x32xf32> to vector<8x32xbf16>
    %76 = vector.extract_strided_slice %13 {offsets = [0, 96], sizes = [8, 32], strides = [1, 1]} : vector<8x128xf32> to vector<8x32xf32>
    %77 = arith.truncf %76 : vector<8x32xf32> to vector<8x32xbf16>
    "tpu.trace_start"() <{level = 10 : i32, message = "sd,td->st"}> : () -> ()
    %cst_24 = arith.constant dense<0.000000e+00> : vector<8x8xf32>
    %78 = tpu.matmul %75, %77, %cst_24 {dimension_numbers = #tpu.dot_dimension_numbers<[1], [1], [0], [0], [0, 0, 1, 0], [], []>} : vector<8x32xbf16>, vector<8x32xbf16>, vector<8x8xf32> -> vector<8x8xf32>
    "tpu.trace_stop"() : () -> ()
    %cst_25 = arith.constant dense<0xFF800000> : vector<8xf32>
    %79 = vector.multi_reduction <maximumf>, %78, %cst_25 [1] : vector<8x8xf32> to vector<8xf32>
    %80 = vector.shape_cast %79 : vector<8xf32> to vector<8x1xf32>
    %81 = vector.broadcast %80 : vector<8x1xf32> to vector<8x8xf32>
    %82 = arith.subf %78, %81 : vector<8x8xf32>
    %83 = math.exp %82 : vector<8x8xf32>
    %cst_26 = arith.constant dense<0.000000e+00> : vector<8xf32>
    %84 = vector.multi_reduction <add>, %83, %cst_26 [1] : vector<8x8xf32> to vector<8xf32>
    %85 = vector.shape_cast %84 : vector<8xf32> to vector<8x1xf32>
    %86 = tpu.reciprocal %85 {approx = true} : vector<8x1xf32> -> vector<8x1xf32>
    %87 = vector.broadcast %86 : vector<8x1xf32> to vector<8x8xf32>
    %88 = arith.mulf %83, %87 : vector<8x8xf32>
    %89 = vector.extract_strided_slice %14 {offsets = [0, 96], sizes = [8, 32], strides = [1, 1]} : vector<8x128xf32> to vector<8x32xf32>
    %cst_27 = arith.constant dense<0.000000e+00> : vector<8x32xf32>
    %90 = tpu.matmul %88, %89, %cst_27 {dimension_numbers = #tpu.dot_dimension_numbers<[1], [0], [0], [1], [0, 0, 1, 1], [], []>} : vector<8x8xf32>, vector<8x32xf32>, vector<8x32xf32> -> vector<8x32xf32>
    %91 = tpu.concatenate %33, %52, %71, %90 in 1 : vector<8x32xf32>, vector<8x32xf32>, vector<8x32xf32>, vector<8x32xf32> -> vector<8x128xf32>
    %92 = arith.truncf %91 : vector<8x128xf32> to vector<8x128xbf16>
    %c0_28 = arith.constant 0 : index
    %c0_29 = arith.constant 0 : index
    %c0_30 = arith.constant 0 : index
    %93 = vector.load %arg5[%c0_28, %c0_29, %c0_30] : memref<1x128x128xbf16, #tpu.memory_space<vmem>>, vector<1x128x128xbf16>
    %94 = vector.shape_cast %93 : vector<1x128x128xbf16> to vector<128x128xbf16>
    %cst_31 = arith.constant dense<0.000000e+00> : vector<8x128xf32>
    %95 = tpu.matmul %92, %94, %cst_31 {dimension_numbers = #tpu.dot_dimension_numbers<[1], [0], [0], [1], [0, 0, 1, 1], [], []>} : vector<8x128xbf16>, vector<128x128xbf16>, vector<8x128xf32> -> vector<8x128xf32>
    %c0_32 = arith.constant 0 : index
    %c0_33 = arith.constant 0 : index
    %c0_34 = arith.constant 0 : index
    %96 = vector.load %arg6[%c0_32, %c0_33, %c0_34] : memref<1x1x128xf32, #tpu.memory_space<vmem>>, vector<1x1x128xf32>
    %97 = vector.shape_cast %96 : vector<1x1x128xf32> to vector<1x128xf32>
    %98 = vector.broadcast %97 : vector<1x128xf32> to vector<8x128xf32>
    %99 = arith.addf %95, %98 : vector<8x128xf32>
    %100 = arith.addf %3, %99 : vector<8x128xf32>
    %c0_35 = arith.constant 0 : index
    %c0_36 = arith.constant 0 : index
    %c0_37 = arith.constant 0 : index
    %101 = vector.load %arg11[%c0_35, %c0_36, %c0_37] : memref<1x1x128xf32, #tpu.memory_space<vmem>>, vector<1x1x128xf32>
    %102 = vector.shape_cast %101 : vector<1x1x128xf32> to vector<1x128xf32>
    %c0_38 = arith.constant 0 : index
    %c0_39 = arith.constant 0 : index
    %c0_40 = arith.constant 0 : index
    %103 = vector.load %arg12[%c0_38, %c0_39, %c0_40] : memref<1x1x128xf32, #tpu.memory_space<vmem>>, vector<1x1x128xf32>
    %104 = vector.shape_cast %103 : vector<1x1x128xf32> to vector<1x128xf32>
    %cst_41 = arith.constant dense<0.000000e+00> : vector<8xf32>
    %105 = vector.multi_reduction <add>, %100, %cst_41 [1] : vector<8x128xf32> to vector<8xf32>
    %106 = vector.shape_cast %105 : vector<8xf32> to vector<8x1xf32>
    %cst_42 = arith.constant 1.280000e+02 : f32
    %107 = vector.broadcast %cst_42 : f32 to vector<8x1xf32>
    %108 = arith.divf %106, %107 : vector<8x1xf32>
    %109 = vector.broadcast %108 : vector<8x1xf32> to vector<8x128xf32>
    %110 = arith.subf %100, %109 : vector<8x128xf32>
    %111 = arith.mulf %110, %110 : vector<8x128xf32>
    %cst_43 = arith.constant dense<0.000000e+00> : vector<8xf32>
    %112 = vector.multi_reduction <add>, %111, %cst_43 [1] : vector<8x128xf32> to vector<8xf32>
    %113 = vector.shape_cast %112 : vector<8xf32> to vector<8x1xf32>
    %cst_44 = arith.constant 1.280000e+02 : f32
    %114 = vector.broadcast %cst_44 : f32 to vector<8x1xf32>
    %115 = arith.divf %113, %114 : vector<8x1xf32>
    %cst_45 = arith.constant 9.99999974E-6 : f32
    %116 = vector.broadcast %cst_45 : f32 to vector<8x1xf32>
    %117 = arith.addf %115, %116 : vector<8x1xf32>
    %118 = math.rsqrt %117 : vector<8x1xf32>
    %119 = vector.broadcast %118 : vector<8x1xf32> to vector<8x128xf32>
    %120 = arith.mulf %110, %119 : vector<8x128xf32>
    %121 = vector.broadcast %102 : vector<1x128xf32> to vector<8x128xf32>
    %122 = arith.mulf %120, %121 : vector<8x128xf32>
    %123 = vector.broadcast %104 : vector<1x128xf32> to vector<8x128xf32>
    %124 = arith.addf %122, %123 : vector<8x128xf32>
    %125 = arith.truncf %124 : vector<8x128xf32> to vector<8x128xbf16>
    %c0_46 = arith.constant 0 : index
    %c0_47 = arith.constant 0 : index
    %c0_48 = arith.constant 0 : index
    %126 = vector.load %arg7[%c0_46, %c0_47, %c0_48] : memref<1x128x1024xbf16, #tpu.memory_space<vmem>>, vector<1x128x1024xbf16>
    %127 = vector.shape_cast %126 : vector<1x128x1024xbf16> to vector<128x1024xbf16>
    %cst_49 = arith.constant dense<0.000000e+00> : vector<8x1024xf32>
    %128 = tpu.matmul %125, %127, %cst_49 {dimension_numbers = #tpu.dot_dimension_numbers<[1], [0], [0], [1], [0, 0, 1, 1], [], []>} : vector<8x128xbf16>, vector<128x1024xbf16>, vector<8x1024xf32> -> vector<8x1024xf32>
    %c0_50 = arith.constant 0 : index
    %c0_51 = arith.constant 0 : index
    %c0_52 = arith.constant 0 : index
    %129 = vector.load %arg8[%c0_50, %c0_51, %c0_52] : memref<1x1x1024xf32, #tpu.memory_space<vmem>>, vector<1x1x1024xf32>
    %130 = vector.shape_cast %129 : vector<1x1x1024xf32> to vector<1x1024xf32>
    %131 = vector.broadcast %130 : vector<1x1024xf32> to vector<8x1024xf32>
    %132 = arith.addf %128, %131 : vector<8x1024xf32>
    %cst_53 = arith.constant 0.000000e+00 : f32
    %133 = vector.broadcast %cst_53 : f32 to vector<8x1024xf32>
    %134 = arith.maximumf %132, %133 : vector<8x1024xf32>
    %135 = arith.truncf %134 : vector<8x1024xf32> to vector<8x1024xbf16>
    %c0_54 = arith.constant 0 : index
    %c0_55 = arith.constant 0 : index
    %c0_56 = arith.constant 0 : index
    %136 = vector.load %arg9[%c0_54, %c0_55, %c0_56] : memref<1x1024x128xbf16, #tpu.memory_space<vmem>>, vector<1x1024x128xbf16>
    %137 = vector.shape_cast %136 : vector<1x1024x128xbf16> to vector<1024x128xbf16>
    %cst_57 = arith.constant dense<0.000000e+00> : vector<8x128xf32>
    %138 = tpu.matmul %135, %137, %cst_57 {dimension_numbers = #tpu.dot_dimension_numbers<[1], [0], [0], [1], [0, 0, 1, 1], [], []>} : vector<8x1024xbf16>, vector<1024x128xbf16>, vector<8x128xf32> -> vector<8x128xf32>
    %c0_58 = arith.constant 0 : index
    %c0_59 = arith.constant 0 : index
    %c0_60 = arith.constant 0 : index
    %139 = vector.load %arg10[%c0_58, %c0_59, %c0_60] : memref<1x1x128xf32, #tpu.memory_space<vmem>>, vector<1x1x128xf32>
    %140 = vector.shape_cast %139 : vector<1x1x128xf32> to vector<1x128xf32>
    %141 = vector.broadcast %140 : vector<1x128xf32> to vector<8x128xf32>
    %142 = arith.addf %138, %141 : vector<8x128xf32>
    %143 = arith.addf %124, %142 : vector<8x128xf32>
    %c0_61 = arith.constant 0 : index
    %c0_62 = arith.constant 0 : index
    %c0_63 = arith.constant 0 : index
    %144 = vector.load %arg13[%c0_61, %c0_62, %c0_63] : memref<1x1x128xf32, #tpu.memory_space<vmem>>, vector<1x1x128xf32>
    %145 = vector.shape_cast %144 : vector<1x1x128xf32> to vector<1x128xf32>
    %c0_64 = arith.constant 0 : index
    %c0_65 = arith.constant 0 : index
    %c0_66 = arith.constant 0 : index
    %146 = vector.load %arg14[%c0_64, %c0_65, %c0_66] : memref<1x1x128xf32, #tpu.memory_space<vmem>>, vector<1x1x128xf32>
    %147 = vector.shape_cast %146 : vector<1x1x128xf32> to vector<1x128xf32>
    %cst_67 = arith.constant dense<0.000000e+00> : vector<8xf32>
    %148 = vector.multi_reduction <add>, %143, %cst_67 [1] : vector<8x128xf32> to vector<8xf32>
    %149 = vector.shape_cast %148 : vector<8xf32> to vector<8x1xf32>
    %cst_68 = arith.constant 1.280000e+02 : f32
    %150 = vector.broadcast %cst_68 : f32 to vector<8x1xf32>
    %151 = arith.divf %149, %150 : vector<8x1xf32>
    %152 = vector.broadcast %151 : vector<8x1xf32> to vector<8x128xf32>
    %153 = arith.subf %143, %152 : vector<8x128xf32>
    %154 = arith.mulf %153, %153 : vector<8x128xf32>
    %cst_69 = arith.constant dense<0.000000e+00> : vector<8xf32>
    %155 = vector.multi_reduction <add>, %154, %cst_69 [1] : vector<8x128xf32> to vector<8xf32>
    %156 = vector.shape_cast %155 : vector<8xf32> to vector<8x1xf32>
    %cst_70 = arith.constant 1.280000e+02 : f32
    %157 = vector.broadcast %cst_70 : f32 to vector<8x1xf32>
    %158 = arith.divf %156, %157 : vector<8x1xf32>
    %cst_71 = arith.constant 9.99999974E-6 : f32
    %159 = vector.broadcast %cst_71 : f32 to vector<8x1xf32>
    %160 = arith.addf %158, %159 : vector<8x1xf32>
    %161 = math.rsqrt %160 : vector<8x1xf32>
    %162 = vector.broadcast %161 : vector<8x1xf32> to vector<8x128xf32>
    %163 = arith.mulf %153, %162 : vector<8x128xf32>
    %164 = vector.broadcast %145 : vector<1x128xf32> to vector<8x128xf32>
    %165 = arith.mulf %163, %164 : vector<8x128xf32>
    %166 = vector.broadcast %147 : vector<1x128xf32> to vector<8x128xf32>
    %167 = arith.addf %165, %166 : vector<8x128xf32>
    %c0_72 = arith.constant 0 : index
    %c0_73 = arith.constant 0 : index
    %168 = vector.load %arg15[%c0_72, %c0_73] : memref<8x128xf32, #tpu.memory_space<vmem>>, vector<8x128xf32>
    tpu.vector_store %arg15[%c0_72, %c0_73], %167 {strides = array<i32>} : memref<8x128xf32, #tpu.memory_space<vmem>>, vector<8x128xf32>,
    return
  }
  func.func @transform_0(%arg0: i32, %arg1: i32) -> (i32, i32) {
    %c0_i32 = arith.constant 0 : i32
    %c0_i32_0 = arith.constant 0 : i32
    return %arg0, %c0_i32 : i32, i32
  }
  func.func @transform_1(%arg0: i32, %arg1: i32) -> (i32, i32, i32) {
    %c0_i32 = arith.constant 0 : i32
    %c0_i32_0 = arith.constant 0 : i32
    %c0_i32_1 = arith.constant 0 : i32
    return %arg1, %c0_i32, %c0_i32_0 : i32, i32, i32
  }
  func.func @transform_2(%arg0: i32, %arg1: i32) -> (i32, i32, i32) {
    %c0_i32 = arith.constant 0 : i32
    %c0_i32_0 = arith.constant 0 : i32
    %c0_i32_1 = arith.constant 0 : i32
    return %arg1, %c0_i32, %c0_i32_0 : i32, i32, i32
  }
  func.func @transform_3(%arg0: i32, %arg1: i32) -> (i32, i32, i32) {
    %c0_i32 = arith.constant 0 : i32
    %c0_i32_0 = arith.constant 0 : i32
    %c0_i32_1 = arith.constant 0 : i32
    return %arg1, %c0_i32, %c0_i32_0 : i32, i32, i32
  }
  func.func @transform_4(%arg0: i32, %arg1: i32) -> (i32, i32, i32) {
    %c0_i32 = arith.constant 0 : i32
    %c0_i32_0 = arith.constant 0 : i32
    %c0_i32_1 = arith.constant 0 : i32
    return %arg1, %c0_i32, %c0_i32_0 : i32, i32, i32
  }
  func.func @transform_5(%arg0: i32, %arg1: i32) -> (i32, i32, i32) {
    %c0_i32 = arith.constant 0 : i32
    %c0_i32_0 = arith.constant 0 : i32
    %c0_i32_1 = arith.constant 0 : i32
    return %arg1, %c0_i32, %c0_i32_0 : i32, i32, i32
  }
  func.func @transform_6(%arg0: i32, %arg1: i32) -> (i32, i32, i32) {
    %c0_i32 = arith.constant 0 : i32
    %c0_i32_0 = arith.constant 0 : i32
    %c0_i32_1 = arith.constant 0 : i32
    return %arg1, %c0_i32, %c0_i32_0 : i32, i32, i32
  }
  func.func @transform_7(%arg0: i32, %arg1: i32) -> (i32, i32, i32) {
    %c0_i32 = arith.constant 0 : i32
    %c0_i32_0 = arith.constant 0 : i32
    %c0_i32_1 = arith.constant 0 : i32
    return %arg1, %c0_i32, %c0_i32_0 : i32, i32, i32
  }
  func.func @transform_8(%arg0: i32, %arg1: i32) -> (i32, i32, i32) {
    %c0_i32 = arith.constant 0 : i32
    %c0_i32_0 = arith.constant 0 : i32
    %c0_i32_1 = arith.constant 0 : i32
    return %arg1, %c0_i32, %c0_i32_0 : i32, i32, i32
  }
  func.func @transform_9(%arg0: i32, %arg1: i32) -> (i32, i32, i32) {
    %c0_i32 = arith.constant 0 : i32
    %c0_i32_0 = arith.constant 0 : i32
    %c0_i32_1 = arith.constant 0 : i32
    return %arg1, %c0_i32, %c0_i32_0 : i32, i32, i32
  }
  func.func @transform_10(%arg0: i32, %arg1: i32) -> (i32, i32, i32) {
    %c0_i32 = arith.constant 0 : i32
    %c0_i32_0 = arith.constant 0 : i32
    %c0_i32_1 = arith.constant 0 : i32
    return %arg1, %c0_i32, %c0_i32_0 : i32, i32, i32
  }
  func.func @transform_11(%arg0: i32, %arg1: i32) -> (i32, i32, i32) {
    %c0_i32 = arith.constant 0 : i32
    %c0_i32_0 = arith.constant 0 : i32
    %c0_i32_1 = arith.constant 0 : i32
    return %arg1, %c0_i32, %c0_i32_0 : i32, i32, i32
  }
  func.func @transform_12(%arg0: i32, %arg1: i32) -> (i32, i32, i32) {
    %c0_i32 = arith.constant 0 : i32
    %c0_i32_0 = arith.constant 0 : i32
    %c0_i32_1 = arith.constant 0 : i32
    return %arg1, %c0_i32, %c0_i32_0 : i32, i32, i32
  }
  func.func @transform_13(%arg0: i32, %arg1: i32) -> (i32, i32) {
    %c0_i32 = arith.constant 0 : i32
    %c0_i32_0 = arith.constant 0 : i32
    return %arg0, %c0_i32 : i32, i32
  }
}

</mosaic_0001>

<llo_original>
// kernel: transformer_encoder_forward.1
$region0: #{transformer_encoder_forward.1}
  #allocation0 [shape = 'u32[]', space=smem, size = 0x4, offset = 0x4, fixed_abs, tag = 'smem constant byte address 0x4 - core index']
  #allocation1 [shape = 'u32[72,128]{1,0:T(1,128)}', space=vmem, size = 0x9000, scoped, tag = 'internal scratch']
  %s0 = inlined_call_operand.vmem [shape: f32[16,128], index: 0, kind: input, shape index: {}]
  %s1 = inlined_call_operand.hbm [shape: bf16[3,128,384], index: 1, kind: input, shape index: {}]
  %s2 = inlined_call_operand.vmem [shape: f32[3,1,384], index: 2, kind: input, shape index: {}]
  %s3 = inlined_call_operand.hbm [shape: bf16[3,128,128], index: 3, kind: input, shape index: {}]
  %s4 = inlined_call_operand.vmem [shape: f32[3,1,128], index: 4, kind: input, shape index: {}]
  %s5 = inlined_call_operand.hbm [shape: bf16[3,128,1024], index: 5, kind: input, shape index: {}]
  %s6 = inlined_call_operand.vmem [shape: f32[3,1,1024], index: 6, kind: input, shape index: {}]
  %s7 = inlined_call_operand.hbm [shape: bf16[3,1024,128], index: 7, kind: input, shape index: {}]
  %s8 = inlined_call_operand.vmem [shape: f32[3,1,128], index: 8, kind: input, shape index: {}]
  %s9 = inlined_call_operand.vmem [shape: f32[3,1,128], index: 9, kind: input, shape index: {}]
  %s10 = inlined_call_operand.vmem [shape: f32[3,1,128], index: 10, kind: input, shape index: {}]
  %s11 = inlined_call_operand.vmem [shape: f32[3,1,128], index: 11, kind: input, shape index: {}]
  %s12 = inlined_call_operand.vmem [shape: f32[3,1,128], index: 12, kind: input, shape index: {}]
  %s13 = inlined_call_operand.vmem [shape: f32[16,128], index: 13, kind: output, shape index: {}]
  %s14 = sld [smem:[#allocation0]]
  $region105: #{transformer_encoder_forward.1} parent=0
    _
  %s16 = ssub.s32 1, %s14
  %s17 = scalar_select 0, %s16, %s14
  $region1: #{transformer_encoder_forward.1} parent=0
    #allocation2 [shape = 'u8[196608]{0}', space=vmem, size = 0x30000, scoped, tag = 'input window, operand 1']
    #allocation3 [shape = 's32[2]{0}', space=sflag, size = 0x8, scoped, tag = 'scoped memory for transformer_encoder_forward.1']
    #allocation4 [shape = 'u8[65536]{0}', space=vmem, size = 0x10000, scoped, tag = 'input window, operand 3']
    #allocation5 [shape = 's32[2]{0}', space=sflag, size = 0x8, scoped, tag = 'scoped memory for transformer_encoder_forward.1']
    #allocation6 [shape = 'u8[524288]{0}', space=vmem, size = 0x80000, scoped, tag = 'input window, operand 5']
    #allocation7 [shape = 'u8[524288]{0}', space=vmem, size = 0x80000, scoped, tag = 'input window, operand 7']
    #allocation8 [shape = 's32[2]{0}', space=sflag, size = 0x8, scoped, tag = 'scoped memory for transformer_encoder_forward.1']
    %18 = vsyncpa [#allocation3], 0
    %s19 = scalar_lea.sflag [#allocation3], 1
    %20 = vsyncpa %s19, 0
    %21 = vsyncpa [#allocation5], 0
    %s22 = scalar_lea.sflag [#allocation5], 1
    %23 = vsyncpa %s22, 0
    %24 = vsyncpa [#allocation8], 0
    %s25 = scalar_lea.sflag [#allocation8], 1
    %26 = vsyncpa %s25, 0
    loop: start=0, step=1, limit=8
    $region2: #{transformer_encoder_forward.1} parent=1 // loop_pre_header
      _
    $region3: #{transformer_encoder_forward.1} parent=1 // loop_header
      %s28 = sphi 0, %s32
      %p29 = scmp.ge.s32.totalorder %s28, 8
      %s35 = sphi 0, %s47
      %s36 = sphi 0, %s43
      %s37 = sphi 0, %s35
      %s38 = sphi 0, %s36
      %s39 = sphi 0, %s37
      %s40 = sphi 0, %s38
      %s50 = sphi 0, %s52
      %s53 = sphi 0, %s50
      %s54 = sphi 0, %s53
      %s70 = sphi 0, %s54
      %s76 = sphi 0, %s78
      %s79 = sphi 0, %s76
      %s80 = sphi 0, %s79
      %s96 = sphi 0, %s80
      %s102 = sphi 0, %s104
      %s105 = sphi 0, %s102
      %s106 = sphi 0, %s105
      %s122 = sphi 0, %s106
      %s128 = sphi 0, %s130
      %s131 = sphi 0, %s128
      %s132 = sphi 0, %s131
      %s148 = sphi 0, %s132
      %s154 = sphi 0, %s156
      %s157 = sphi 0, %s154
      %s158 = sphi 0, %s157
      %s174 = sphi 0, %s158
      %s180 = sphi 0, %s182
      %s183 = sphi 0, %s180
      %s184 = sphi 0, %s183
      %s200 = sphi 0, %s184
      %s206 = sphi 0, %s208
      %s209 = sphi 0, %s206
      %s210 = sphi 0, %s209
      %s226 = sphi 0, %s210
      %s232 = sphi 0, %s234
      %s235 = sphi 0, %s232
      %s236 = sphi 0, %s235
      %s252 = sphi 0, %s236
      %s258 = sphi 0, %s260
      %s261 = sphi 0, %s258
      %s262 = sphi 0, %s261
      %s278 = sphi 0, %s262
      %s284 = sphi 0, %s286
      %s287 = sphi 0, %s284
      %s288 = sphi 0, %s287
      %s304 = sphi 0, %s288
      %s310 = sphi 0, %s312
      %s313 = sphi 0, %s310
      %s314 = sphi 0, %s313
      %s330 = sphi 0, %s314
      %s336 = sphi 0, %s338
      %s339 = sphi 0, %s336
      %s340 = sphi 0, %s339
      %s356 = sphi 0, %s340
      %s362 = sphi 0, %s364
      %s365 = sphi 0, %s362
      %s366 = sphi 0, %s365
      %s382 = sphi 0, %s366
      %s388 = sphi 0, %s390
      %s391 = sphi 0, %s388
      %s392 = sphi 0, %s391
      %s408 = sphi 0, %s392
    $region4: #{transformer_encoder_forward.1} parent=1 // loop_header_branch
      %31 = sbr.rel (%p29) target = $region8
    $region5: #{transformer_encoder_forward.1} parent=1 // loop_body
      %s33 = ssub.s32 %s28, 1
      %s34 = ssub.s32 %s28, 2
      %s41 = sadd.s32 1, %s36
      %p42 = scmp.ge.s32.totalorder %s41, 3
      %s43 = scalar_select %p42, 0, %s41
      %s44 = sadd.s32 1, %s35
      %s45 = scalar_select %p42, %s44, %s35
      %p46 = scmp.ge.s32.totalorder %s45, 2
      %s47 = scalar_select %p46, 0, %s45
      %s48 = ssub.s32 %s35, %s47
      %p49 = scmp.eq.s32.totalorder %s48, 0
      %s51 = sadd.s32 %s50, 1
      %s52 = scalar_select %p49, %s50, %s51
      %p55 = pneg %p49
      %p56 = scmp.eq.s32.totalorder %s28, 5
      %p57 = por %p55, %p56
      %p58 = scmp.ne.s32.totalorder %s50, %s53
      %p59 = scmp.eq.s32.totalorder %s28, 0
      %p60 = por %p58, %p59
      %p61 = scmp.ne.s32.totalorder %s50, %s53
      %p62 = scmp.eq.s32.totalorder %s33, 5
      %p63 = por %p61, %p62
      %p64 = scmp.ne.s32.totalorder %s53, %s54
      %p65 = scmp.eq.s32.totalorder %s33, 0
      %p66 = por %p64, %p65
      %p67 = scmp.ne.s32.totalorder %s53, %s54
      %p68 = scmp.eq.s32.totalorder %s34, 5
      %p69 = por %p67, %p68
      %p71 = scmp.ne.s32.totalorder %s54, %s70
      %p72 = scmp.eq.s32.totalorder %s34, 0
      %p73 = por %p71, %p72
      %s74 = ssub.s32 %s36, %s43
      %p75 = scmp.eq.s32.totalorder %s74, 0
      %s77 = sadd.s32 %s76, 1
      %s78 = scalar_select %p75, %s76, %s77
      %p81 = pneg %p75
      %p82 = scmp.eq.s32.totalorder %s28, 5
      %p83 = por %p81, %p82
      %p84 = scmp.ne.s32.totalorder %s76, %s79
      %p85 = scmp.eq.s32.totalorder %s28, 0
      %p86 = por %p84, %p85
      %p87 = scmp.ne.s32.totalorder %s76, %s79
      %p88 = scmp.eq.s32.totalorder %s33, 5
      %p89 = por %p87, %p88
      %p90 = scmp.ne.s32.totalorder %s79, %s80
      %p91 = scmp.eq.s32.totalorder %s33, 0
      %p92 = por %p90, %p91
      %p93 = scmp.ne.s32.totalorder %s79, %s80
      %p94 = scmp.eq.s32.totalorder %s34, 5
      %p95 = por %p93, %p94
      %p97 = scmp.ne.s32.totalorder %s80, %s96
      %p98 = scmp.eq.s32.totalorder %s34, 0
      %p99 = por %p97, %p98
      %s100 = ssub.s32 %s36, %s43
      %p101 = scmp.eq.s32.totalorder %s100, 0
      %s103 = sadd.s32 %s102, 1
      %s104 = scalar_select %p101, %s102, %s103
      %p107 = pneg %p101
      %p108 = scmp.eq.s32.totalorder %s28, 5
      %p109 = por %p107, %p108
      %p110 = scmp.ne.s32.totalorder %s102, %s105
      %p111 = scmp.eq.s32.totalorder %s28, 0
      %p112 = por %p110, %p111
      %p113 = scmp.ne.s32.totalorder %s102, %s105
      %p114 = scmp.eq.s32.totalorder %s33, 5
      %p115 = por %p113, %p114
      %p116 = scmp.ne.s32.totalorder %s105, %s106
      %p117 = scmp.eq.s32.totalorder %s33, 0
      %p118 = por %p116, %p117
      %p119 = scmp.ne.s32.totalorder %s105, %s106
      %p120 = scmp.eq.s32.totalorder %s34, 5
      %p121 = por %p119, %p120
      %p123 = scmp.ne.s32.totalorder %s106, %s122
      %p124 = scmp.eq.s32.totalorder %s34, 0
      %p125 = por %p123, %p124
      %s126 = ssub.s32 %s36, %s43
      %p127 = scmp.eq.s32.totalorder %s126, 0
      %s129 = sadd.s32 %s128, 1
      %s130 = scalar_select %p127, %s128, %s129
      %p133 = pneg %p127
      %p134 = scmp.eq.s32.totalorder %s28, 5
      %p135 = por %p133, %p134
      %p136 = scmp.ne.s32.totalorder %s128, %s131
      %p137 = scmp.eq.s32.totalorder %s28, 0
      %p138 = por %p136, %p137
      %p139 = scmp.ne.s32.totalorder %s128, %s131
      %p140 = scmp.eq.s32.totalorder %s33, 5
      %p141 = por %p139, %p140
      %p142 = scmp.ne.s32.totalorder %s131, %s132
      %p143 = scmp.eq.s32.totalorder %s33, 0
      %p144 = por %p142, %p143
      %p145 = scmp.ne.s32.totalorder %s131, %s132
      %p146 = scmp.eq.s32.totalorder %s34, 5
      %p147 = por %p145, %p146
      %p149 = scmp.ne.s32.totalorder %s132, %s148
      %p150 = scmp.eq.s32.totalorder %s34, 0
      %p151 = por %p149, %p150
      %s152 = ssub.s32 %s36, %s43
      %p153 = scmp.eq.s32.totalorder %s152, 0
      %s155 = sadd.s32 %s154, 1
      %s156 = scalar_select %p153, %s154, %s155
      %p159 = pneg %p153
      %p160 = scmp.eq.s32.totalorder %s28, 5
      %p161 = por %p159, %p160
      %p162 = scmp.ne.s32.totalorder %s154, %s157
      %p163 = scmp.eq.s32.totalorder %s28, 0
      %p164 = por %p162, %p163
      %p165 = scmp.ne.s32.totalorder %s154, %s157
      %p166 = scmp.eq.s32.totalorder %s33, 5
      %p167 = por %p165, %p166
      %p168 = scmp.ne.s32.totalorder %s157, %s158
      %p169 = scmp.eq.s32.totalorder %s33, 0
      %p170 = por %p168, %p169
      %p171 = scmp.ne.s32.totalorder %s157, %s158
      %p172 = scmp.eq.s32.totalorder %s34, 5
      %p173 = por %p171, %p172
      %p175 = scmp.ne.s32.totalorder %s158, %s174
      %p176 = scmp.eq.s32.totalorder %s34, 0
      %p177 = por %p175, %p176
      %s178 = ssub.s32 %s36, %s43
      %p179 = scmp.eq.s32.totalorder %s178, 0
      %s181 = sadd.s32 %s180, 1
      %s182 = scalar_select %p179, %s180, %s181
      %p185 = pneg %p179
      %p186 = scmp.eq.s32.totalorder %s28, 5
      %p187 = por %p185, %p186
      %p188 = scmp.ne.s32.totalorder %s180, %s183
      %p189 = scmp.eq.s32.totalorder %s28, 0
      %p190 = por %p188, %p189
      %p191 = scmp.ne.s32.totalorder %s180, %s183
      %p192 = scmp.eq.s32.totalorder %s33, 5
      %p193 = por %p191, %p192
      %p194 = scmp.ne.s32.totalorder %s183, %s184
      %p195 = scmp.eq.s32.totalorder %s33, 0
      %p196 = por %p194, %p195
      %p197 = scmp.ne.s32.totalorder %s183, %s184
      %p198 = scmp.eq.s32.totalorder %s34, 5
      %p199 = por %p197, %p198
      %p201 = scmp.ne.s32.totalorder %s184, %s200
      %p202 = scmp.eq.s32.totalorder %s34, 0
      %p203 = por %p201, %p202
      %s204 = ssub.s32 %s36, %s43
      %p205 = scmp.eq.s32.totalorder %s204, 0
      %s207 = sadd.s32 %s206, 1
      %s208 = scalar_select %p205, %s206, %s207
      %p211 = pneg %p205
      %p212 = scmp.eq.s32.totalorder %s28, 5
      %p213 = por %p211, %p212
      %p214 = scmp.ne.s32.totalorder %s206, %s209
      %p215 = scmp.eq.s32.totalorder %s28, 0
      %p216 = por %p214, %p215
      %p217 = scmp.ne.s32.totalorder %s206, %s209
      %p218 = scmp.eq.s32.totalorder %s33, 5
      %p219 = por %p217, %p218
      %p220 = scmp.ne.s32.totalorder %s209, %s210
      %p221 = scmp.eq.s32.totalorder %s33, 0
      %p222 = por %p220, %p221
      %p223 = scmp.ne.s32.totalorder %s209, %s210
      %p224 = scmp.eq.s32.totalorder %s34, 5
      %p225 = por %p223, %p224
      %p227 = scmp.ne.s32.totalorder %s210, %s226
      %p228 = scmp.eq.s32.totalorder %s34, 0
      %p229 = por %p227, %p228
      %s230 = ssub.s32 %s36, %s43
      %p231 = scmp.eq.s32.totalorder %s230, 0
      %s233 = sadd.s32 %s232, 1
      %s234 = scalar_select %p231, %s232, %s233
      %p237 = pneg %p231
      %p238 = scmp.eq.s32.totalorder %s28, 5
      %p239 = por %p237, %p238
      %p240 = scmp.ne.s32.totalorder %s232, %s235
      %p241 = scmp.eq.s32.totalorder %s28, 0
      %p242 = por %p240, %p241
      %p243 = scmp.ne.s32.totalorder %s232, %s235
      %p244 = scmp.eq.s32.totalorder %s33, 5
      %p245 = por %p243, %p244
      %p246 = scmp.ne.s32.totalorder %s235, %s236
      %p247 = scmp.eq.s32.totalorder %s33, 0
      %p248 = por %p246, %p247
      %p249 = scmp.ne.s32.totalorder %s235, %s236
      %p250 = scmp.eq.s32.totalorder %s34, 5
      %p251 = por %p249, %p250
      %p253 = scmp.ne.s32.totalorder %s236, %s252
      %p254 = scmp.eq.s32.totalorder %s34, 0
      %p255 = por %p253, %p254
      %s256 = ssub.s32 %s36, %s43
      %p257 = scmp.eq.s32.totalorder %s256, 0
      %s259 = sadd.s32 %s258, 1
      %s260 = scalar_select %p257, %s258, %s259
      %p263 = pneg %p257
      %p264 = scmp.eq.s32.totalorder %s28, 5
      %p265 = por %p263, %p264
      %p266 = scmp.ne.s32.totalorder %s258, %s261
      %p267 = scmp.eq.s32.totalorder %s28, 0
      %p268 = por %p266, %p267
      %p269 = scmp.ne.s32.totalorder %s258, %s261
      %p270 = scmp.eq.s32.totalorder %s33, 5
      %p271 = por %p269, %p270
      %p272 = scmp.ne.s32.totalorder %s261, %s262
      %p273 = scmp.eq.s32.totalorder %s33, 0
      %p274 = por %p272, %p273
      %p275 = scmp.ne.s32.totalorder %s261, %s262
      %p276 = scmp.eq.s32.totalorder %s34, 5
      %p277 = por %p275, %p276
      %p279 = scmp.ne.s32.totalorder %s262, %s278
      %p280 = scmp.eq.s32.totalorder %s34, 0
      %p281 = por %p279, %p280
      %s282 = ssub.s32 %s36, %s43
      %p283 = scmp.eq.s32.totalorder %s282, 0
      %s285 = sadd.s32 %s284, 1
      %s286 = scalar_select %p283, %s284, %s285
      %p289 = pneg %p283
      %p290 = scmp.eq.s32.totalorder %s28, 5
      %p291 = por %p289, %p290
      %p292 = scmp.ne.s32.totalorder %s284, %s287
      %p293 = scmp.eq.s32.totalorder %s28, 0
      %p294 = por %p292, %p293
      %p295 = scmp.ne.s32.totalorder %s284, %s287
      %p296 = scmp.eq.s32.totalorder %s33, 5
      %p297 = por %p295, %p296
      %p298 = scmp.ne.s32.totalorder %s287, %s288
      %p299 = scmp.eq.s32.totalorder %s33, 0
      %p300 = por %p298, %p299
      %p301 = scmp.ne.s32.totalorder %s287, %s288
      %p302 = scmp.eq.s32.totalorder %s34, 5
      %p303 = por %p301, %p302
      %p305 = scmp.ne.s32.totalorder %s288, %s304
      %p306 = scmp.eq.s32.totalorder %s34, 0
      %p307 = por %p305, %p306
      %s308 = ssub.s32 %s36, %s43
      %p309 = scmp.eq.s32.totalorder %s308, 0
      %s311 = sadd.s32 %s310, 1
      %s312 = scalar_select %p309, %s310, %s311
      %p315 = pneg %p309
      %p316 = scmp.eq.s32.totalorder %s28, 5
      %p317 = por %p315, %p316
      %p318 = scmp.ne.s32.totalorder %s310, %s313
      %p319 = scmp.eq.s32.totalorder %s28, 0
      %p320 = por %p318, %p319
      %p321 = scmp.ne.s32.totalorder %s310, %s313
      %p322 = scmp.eq.s32.totalorder %s33, 5
      %p323 = por %p321, %p322
      %p324 = scmp.ne.s32.totalorder %s313, %s314
      %p325 = scmp.eq.s32.totalorder %s33, 0
      %p326 = por %p324, %p325
      %p327 = scmp.ne.s32.totalorder %s313, %s314
      %p328 = scmp.eq.s32.totalorder %s34, 5
      %p329 = por %p327, %p328
      %p331 = scmp.ne.s32.totalorder %s314, %s330
      %p332 = scmp.eq.s32.totalorder %s34, 0
      %p333 = por %p331, %p332
      %s334 = ssub.s32 %s36, %s43
      %p335 = scmp.eq.s32.totalorder %s334, 0
      %s337 = sadd.s32 %s336, 1
      %s338 = scalar_select %p335, %s336, %s337
      %p341 = pneg %p335
      %p342 = scmp.eq.s32.totalorder %s28, 5
      %p343 = por %p341, %p342
      %p344 = scmp.ne.s32.totalorder %s336, %s339
      %p345 = scmp.eq.s32.totalorder %s28, 0
      %p346 = por %p344, %p345
      %p347 = scmp.ne.s32.totalorder %s336, %s339
      %p348 = scmp.eq.s32.totalorder %s33, 5
      %p349 = por %p347, %p348
      %p350 = scmp.ne.s32.totalorder %s339, %s340
      %p351 = scmp.eq.s32.totalorder %s33, 0
      %p352 = por %p350, %p351
      %p353 = scmp.ne.s32.totalorder %s339, %s340
      %p354 = scmp.eq.s32.totalorder %s34, 5
      %p355 = por %p353, %p354
      %p357 = scmp.ne.s32.totalorder %s340, %s356
      %p358 = scmp.eq.s32.totalorder %s34, 0
      %p359 = por %p357, %p358
      %s360 = ssub.s32 %s36, %s43
      %p361 = scmp.eq.s32.totalorder %s360, 0
      %s363 = sadd.s32 %s362, 1
      %s364 = scalar_select %p361, %s362, %s363
      %p367 = pneg %p361
      %p368 = scmp.eq.s32.totalorder %s28, 5
      %p369 = por %p367, %p368
      %p370 = scmp.ne.s32.totalorder %s362, %s365
      %p371 = scmp.eq.s32.totalorder %s28, 0
      %p372 = por %p370, %p371
      %p373 = scmp.ne.s32.totalorder %s362, %s365
      %p374 = scmp.eq.s32.totalorder %s33, 5
      %p375 = por %p373, %p374
      %p376 = scmp.ne.s32.totalorder %s365, %s366
      %p377 = scmp.eq.s32.totalorder %s33, 0
      %p378 = por %p376, %p377
      %p379 = scmp.ne.s32.totalorder %s365, %s366
      %p380 = scmp.eq.s32.totalorder %s34, 5
      %p381 = por %p379, %p380
      %p383 = scmp.ne.s32.totalorder %s366, %s382
      %p384 = scmp.eq.s32.totalorder %s34, 0
      %p385 = por %p383, %p384
      %s386 = ssub.s32 %s35, %s47
      %p387 = scmp.eq.s32.totalorder %s386, 0
      %s389 = sadd.s32 %s388, 1
      %s390 = scalar_select %p387, %s388, %s389
      %p393 = pneg %p387
      %p394 = scmp.eq.s32.totalorder %s28, 5
      %p395 = por %p393, %p394
      %p396 = scmp.ne.s32.totalorder %s388, %s391
      %p397 = scmp.eq.s32.totalorder %s28, 0
      %p398 = por %p396, %p397
      %p399 = scmp.ne.s32.totalorder %s388, %s391
      %p400 = scmp.eq.s32.totalorder %s33, 5
      %p401 = por %p399, %p400
      %p402 = scmp.ne.s32.totalorder %s391, %s392
      %p403 = scmp.eq.s32.totalorder %s33, 0
      %p404 = por %p402, %p403
      %p405 = scmp.ne.s32.totalorder %s391, %s392
      %p406 = scmp.eq.s32.totalorder %s34, 5
      %p407 = por %p405, %p406
      %p409 = scmp.ne.s32.totalorder %s392, %s408
      %p410 = scmp.eq.s32.totalorder %s34, 0
      %p411 = por %p409, %p410
      %p412 = scmp.le.s32.totalorder 1, %s28
      %p413 = scmp.lt.s32.totalorder %s28, 7
      %p414 = pnand %p412, %p413
      %p415 = pneg %p414
      // Predicated region
      $region9: #{transformer_encoder_forward.1} parent=5 // pred_check
        _
      $region10: #{transformer_encoder_forward.1} parent=5 // pred_check_branch
        %417 = sbr.rel (%p414) target = $region12
      $region11: #{transformer_encoder_forward.1} parent=5 // pred_region
        %s418 = ssub.s32 %s28, 1
      $region12: #{transformer_encoder_forward.1} parent=5 // pred_fallthru
        _
      %p419 = scmp.lt.s32.totalorder %s28, 6
      // Predicated region
      $region13: #{transformer_encoder_forward.1} parent=5 // pred_check
        %p420 = pneg %p419
      $region14: #{transformer_encoder_forward.1} parent=5 // pred_check_branch
        %422 = sbr.rel (%p420) target = $region16
      $region15: #{transformer_encoder_forward.1} parent=5 // pred_region
        // Predicated region
        $region17: #{transformer_encoder_forward.1} parent=15 // pred_check
          %p423 = pneg %p60
        $region18: #{transformer_encoder_forward.1} parent=15 // pred_check_branch
          %425 = sbr.rel (%p423) target = $region20
        $region19: #{transformer_encoder_forward.1} parent=15 // pred_region
          %p426 = scmp.lt.s32.totalorder %s35, 1
          %s427 = scalar_select %p426, %s35, 1
          %s428 = smul.addr %s427, 8
          %s429 = scalar_lea.vmem %s0, %s428
        $region20: #{transformer_encoder_forward.1} parent=15 // pred_fallthru
          _
        // Predicated region
        $region21: #{transformer_encoder_forward.1} parent=15 // pred_check
          %p430 = pneg %p86
        $region22: #{transformer_encoder_forward.1} parent=15 // pred_check_branch
          %432 = sbr.rel (%p430) target = $region24
        $region23: #{transformer_encoder_forward.1} parent=15 // pred_region
          %s433 = sand.u32 %s76, 1
          %s434 = scalar_lea.sflag [#allocation3], %s433
          %s435 = sand.u32 %s76, 1
          %s436 = smul.addr %s435, 192
          %s437 = scalar_lea.vmem [#allocation2], %s436
          %439 = vsyncadd %s434, 0
          %s440 = smul.addr %s36, 48
          %s441 = smul.addr %s440, 4
          %s442 = scalar_lea.hbm %s1, %s441
          %s443 = sshll.u32 %s442, 4
          %s444 = int_to_ptr.hbm [resolvable:$true] %s443
          %s445 = sshll.u32 %s437, 4
          %s446 = int_to_ptr.vmem [resolvable:$true] %s445
          %451 = dma.hbm_to_vmem [thread:$0]  %s444, 3072, %s446, %s434, 192, 192, 12
        $region24: #{transformer_encoder_forward.1} parent=15 // pred_fallthru
          _
        // Predicated region
        $region25: #{transformer_encoder_forward.1} parent=15 // pred_check
          %p452 = pneg %p112
        $region26: #{transformer_encoder_forward.1} parent=15 // pred_check_branch
          %454 = sbr.rel (%p452) target = $region28
        $region27: #{transformer_encoder_forward.1} parent=15 // pred_region
          %p455 = scmp.lt.s32.totalorder %s36, 2
          %s456 = scalar_select %p455, %s36, 2
          %s457 = smul.addr %s456, 3
          %s458 = scalar_lea.vmem %s2, %s457
        $region28: #{transformer_encoder_forward.1} parent=15 // pred_fallthru
          _
        // Predicated region
        $region29: #{transformer_encoder_forward.1} parent=15 // pred_check
          %p459 = pneg %p138
        $region30: #{transformer_encoder_forward.1} parent=15 // pred_check_branch
          %461 = sbr.rel (%p459) target = $region32
        $region31: #{transformer_encoder_forward.1} parent=15 // pred_region
          %s462 = sand.u32 %s28, 1
          %s463 = scalar_lea.sflag [#allocation5], %s462
          %s464 = sand.u32 %s128, 1
          %s465 = smul.addr %s464, 64
          %s466 = scalar_lea.vmem [#allocation4], %s465
          %468 = vsyncadd %s463, 0
          %s469 = smul.addr %s36, 16
          %s470 = smul.addr %s469, 4
          %s471 = scalar_lea.hbm %s3, %s470
          %s472 = sshll.u32 %s471, 4
          %s473 = int_to_ptr.hbm [resolvable:$true] %s472
          %s474 = sshll.u32 %s466, 4
          %s475 = int_to_ptr.vmem [resolvable:$true] %s474
          %480 = dma.hbm_to_vmem [thread:$0]  %s473, 1024, %s475, %s463, 64, 64, 4
        $region32: #{transformer_encoder_forward.1} parent=15 // pred_fallthru
          _
        // Predicated region
        $region33: #{transformer_encoder_forward.1} parent=15 // pred_check
          %p481 = pneg %p164
        $region34: #{transformer_encoder_forward.1} parent=15 // pred_check_branch
          %483 = sbr.rel (%p481) target = $region36
        $region35: #{transformer_encoder_forward.1} parent=15 // pred_region
          %p484 = scmp.lt.s32.totalorder %s36, 2
          %s485 = scalar_select %p484, %s36, 2
          %s486 = scalar_lea.vmem %s4, %s485
        $region36: #{transformer_encoder_forward.1} parent=15 // pred_fallthru
          _
        // Predicated region
        $region37: #{transformer_encoder_forward.1} parent=15 // pred_check
          %p487 = pneg %p190
        $region38: #{transformer_encoder_forward.1} parent=15 // pred_check_branch
          %489 = sbr.rel (%p487) target = $region40
        $region39: #{transformer_encoder_forward.1} parent=15 // pred_region
          %s490 = sand.u32 %s28, 1
          %s491 = scalar_lea.sflag [#allocation5], %s490
          %s492 = sand.u32 %s180, 1
          %s493 = smul.addr %s492, 512
          %s494 = scalar_lea.vmem [#allocation6], %s493
          %496 = vsyncadd %s491, 0
          %s497 = smul.addr %s36, 128
          %s498 = smul.addr %s497, 4
          %s499 = scalar_lea.hbm %s5, %s498
          %s500 = sshll.u32 %s499, 4
          %s501 = int_to_ptr.hbm [resolvable:$true] %s500
          %s502 = sshll.u32 %s494, 4
          %s503 = int_to_ptr.vmem [resolvable:$true] %s502
          %508 = dma.hbm_to_vmem [thread:$0]  %s501, 8192, %s503, %s491, 512, 512, 32
        $region40: #{transformer_encoder_forward.1} parent=15 // pred_fallthru
          _
        // Predicated region
        $region41: #{transformer_encoder_forward.1} parent=15 // pred_check
          %p509 = pneg %p216
        $region42: #{transformer_encoder_forward.1} parent=15 // pred_check_branch
          %511 = sbr.rel (%p509) target = $region44
        $region43: #{transformer_encoder_forward.1} parent=15 // pred_region
          %p512 = scmp.lt.s32.totalorder %s36, 2
          %s513 = scalar_select %p512, %s36, 2
          %s514 = smul.addr %s513, 8
          %s515 = scalar_lea.vmem %s6, %s514
        $region44: #{transformer_encoder_forward.1} parent=15 // pred_fallthru
          _
        // Predicated region
        $region45: #{transformer_encoder_forward.1} parent=15 // pred_check
          %p516 = pneg %p242
        $region46: #{transformer_encoder_forward.1} parent=15 // pred_check_branch
          %518 = sbr.rel (%p516) target = $region48
        $region47: #{transformer_encoder_forward.1} parent=15 // pred_region
          %s519 = sand.u32 %s232, 1
          %s520 = scalar_lea.sflag [#allocation8], %s519
          %s521 = sand.u32 %s232, 1
          %s522 = smul.addr %s521, 512
          %s523 = scalar_lea.vmem [#allocation7], %s522
          %525 = vsyncadd %s520, 0
          %s526 = smul.addr %s36, 128
          %s527 = smul.addr %s526, 4
          %s528 = scalar_lea.hbm %s7, %s527
          %s529 = sshll.u32 %s528, 4
          %s530 = int_to_ptr.hbm [resolvable:$true] %s529
          %s531 = sshll.u32 %s523, 4
          %s532 = int_to_ptr.vmem [resolvable:$true] %s531
          %537 = dma.hbm_to_vmem [thread:$0]  %s530, 8192, %s532, %s520, 64, 64, 4
        $region48: #{transformer_encoder_forward.1} parent=15 // pred_fallthru
          _
        // Predicated region
        $region49: #{transformer_encoder_forward.1} parent=15 // pred_check
          %p538 = pneg %p268
        $region50: #{transformer_encoder_forward.1} parent=15 // pred_check_branch
          %540 = sbr.rel (%p538) target = $region52
        $region51: #{transformer_encoder_forward.1} parent=15 // pred_region
          %p541 = scmp.lt.s32.totalorder %s36, 2
          %s542 = scalar_select %p541, %s36, 2
          %s543 = scalar_lea.vmem %s8, %s542
        $region52: #{transformer_encoder_forward.1} parent=15 // pred_fallthru
          _
        // Predicated region
        $region53: #{transformer_encoder_forward.1} parent=15 // pred_check
          %p544 = pneg %p294
        $region54: #{transformer_encoder_forward.1} parent=15 // pred_check_branch
          %546 = sbr.rel (%p544) target = $region56
        $region55: #{transformer_encoder_forward.1} parent=15 // pred_region
          %p547 = scmp.lt.s32.totalorder %s36, 2
          %s548 = scalar_select %p547, %s36, 2
          %s549 = scalar_lea.vmem %s9, %s548
        $region56: #{transformer_encoder_forward.1} parent=15 // pred_fallthru
          _
        // Predicated region
        $region57: #{transformer_encoder_forward.1} parent=15 // pred_check
          %p550 = pneg %p320
        $region58: #{transformer_encoder_forward.1} parent=15 // pred_check_branch
          %552 = sbr.rel (%p550) target = $region60
        $region59: #{transformer_encoder_forward.1} parent=15 // pred_region
          %p553 = scmp.lt.s32.totalorder %s36, 2
          %s554 = scalar_select %p553, %s36, 2
          %s555 = scalar_lea.vmem %s10, %s554
        $region60: #{transformer_encoder_forward.1} parent=15 // pred_fallthru
          _
        // Predicated region
        $region61: #{transformer_encoder_forward.1} parent=15 // pred_check
          %p556 = pneg %p346
        $region62: #{transformer_encoder_forward.1} parent=15 // pred_check_branch
          %558 = sbr.rel (%p556) target = $region64
        $region63: #{transformer_encoder_forward.1} parent=15 // pred_region
          %p559 = scmp.lt.s32.totalorder %s36, 2
          %s560 = scalar_select %p559, %s36, 2
          %s561 = scalar_lea.vmem %s11, %s560
        $region64: #{transformer_encoder_forward.1} parent=15 // pred_fallthru
          _
        // Predicated region
        $region65: #{transformer_encoder_forward.1} parent=15 // pred_check
          %p562 = pneg %p372
        $region66: #{transformer_encoder_forward.1} parent=15 // pred_check_branch
          %564 = sbr.rel (%p562) target = $region68
        $region67: #{transformer_encoder_forward.1} parent=15 // pred_region
          %p565 = scmp.lt.s32.totalorder %s36, 2
          %s566 = scalar_select %p565, %s36, 2
          %s567 = scalar_lea.vmem %s12, %s566
        $region68: #{transformer_encoder_forward.1} parent=15 // pred_fallthru
          _
      $region16: #{transformer_encoder_forward.1} parent=5 // pred_fallthru
        _
      %p568 = scmp.le.s32.totalorder 1, %s28
      %p569 = scmp.lt.s32.totalorder %s28, 7
      %p570 = pnand %p568, %p569
      %p571 = pneg %p570
      // Predicated region
      $region69: #{transformer_encoder_forward.1} parent=5 // pred_check
        _
      $region70: #{transformer_encoder_forward.1} parent=5 // pred_check_branch
        %573 = sbr.rel (%p570) target = $region72
      $region71: #{transformer_encoder_forward.1} parent=5 // pred_region
        %s574 = ssub.s32 %s28, 1
        %s575 = sand.u32 %s79, 1
        %s576 = scalar_lea.sflag [#allocation3], %s575
        %s577 = sand.u32 %s79, 1
        %s578 = smul.addr %s577, 192
        %s579 = scalar_lea.vmem [#allocation2], %s578
        // Predicated region
        $region73: #{transformer_encoder_forward.1} parent=71 // pred_check
          %p580 = pneg %p92
        $region74: #{transformer_encoder_forward.1} parent=71 // pred_check_branch
          %582 = sbr.rel (%p580) target = $region76
        $region75: #{transformer_encoder_forward.1} parent=71 // pred_region
          %584 = dma.done %s576, 3072
        $region76: #{transformer_encoder_forward.1} parent=71 // pred_fallthru
          _
        %s585 = sand.u32 %s33, 1
        %s586 = scalar_lea.sflag [#allocation5], %s585
        %s587 = sand.u32 %s131, 1
        %s588 = smul.addr %s587, 64
        %s589 = scalar_lea.vmem [#allocation4], %s588
        // Predicated region
        $region77: #{transformer_encoder_forward.1} parent=71 // pred_check
          %p590 = pneg %p144
        $region78: #{transformer_encoder_forward.1} parent=71 // pred_check_branch
          %592 = sbr.rel (%p590) target = $region80
        $region79: #{transformer_encoder_forward.1} parent=71 // pred_region
          %594 = dma.done %s586, 1024
        $region80: #{transformer_encoder_forward.1} parent=71 // pred_fallthru
          _
        %s595 = sand.u32 %s33, 1
        %s596 = scalar_lea.sflag [#allocation5], %s595
        %s597 = sand.u32 %s183, 1
        %s598 = smul.addr %s597, 512
        %s599 = scalar_lea.vmem [#allocation6], %s598
        // Predicated region
        $region81: #{transformer_encoder_forward.1} parent=71 // pred_check
          %p600 = pneg %p196
        $region82: #{transformer_encoder_forward.1} parent=71 // pred_check_branch
          %602 = sbr.rel (%p600) target = $region84
        $region83: #{transformer_encoder_forward.1} parent=71 // pred_region
          %604 = dma.done %s596, 8192
        $region84: #{transformer_encoder_forward.1} parent=71 // pred_fallthru
          _
        %s605 = sand.u32 %s235, 1
        %s606 = scalar_lea.sflag [#allocation8], %s605
        %s607 = sand.u32 %s235, 1
        %s608 = smul.addr %s607, 512
        %s609 = scalar_lea.vmem [#allocation7], %s608
        // Predicated region
        $region85: #{transformer_encoder_forward.1} parent=71 // pred_check
          %p610 = pneg %p248
        $region86: #{transformer_encoder_forward.1} parent=71 // pred_check_branch
          %612 = sbr.rel (%p610) target = $region88
        $region87: #{transformer_encoder_forward.1} parent=71 // pred_region
          %614 = dma.done %s606, 8192
        $region88: #{transformer_encoder_forward.1} parent=71 // pred_fallthru
          _
        %p615 = scmp.lt.s32.totalorder %s37, 1
        %s616 = scalar_select %p615, %s37, 1
        %s617 = smul.addr %s616, 8
        %s618 = scalar_lea.vmem %s0, %s617
        %p619 = pneg %p66
        %p620 = pneg %p63
        %s621 = sand.u32 %s79, 1
        %s622 = scalar_lea.sflag [#allocation3], %s621
        %s623 = sand.u32 %s79, 1
        %s624 = smul.addr %s623, 192
        %s625 = scalar_lea.vmem [#allocation2], %s624
        %p626 = pneg %p92
        %p627 = pneg %p89
        %p628 = scmp.lt.s32.totalorder %s38, 2
        %s629 = scalar_select %p628, %s38, 2
        %s630 = smul.addr %s629, 3
        %s631 = scalar_lea.vmem %s2, %s630
        %p632 = pneg %p118
        %p633 = pneg %p115
        %s634 = sand.u32 %s33, 1
        %s635 = scalar_lea.sflag [#allocation5], %s634
        %s636 = sand.u32 %s131, 1
        %s637 = smul.addr %s636, 64
        %s638 = scalar_lea.vmem [#allocation4], %s637
        %p639 = pneg %p144
        %p640 = pneg %p141
        %p641 = scmp.lt.s32.totalorder %s38, 2
        %s642 = scalar_select %p641, %s38, 2
        %s643 = scalar_lea.vmem %s4, %s642
        %p644 = pneg %p170
        %p645 = pneg %p167
        %s646 = sand.u32 %s33, 1
        %s647 = scalar_lea.sflag [#allocation5], %s646
        %s648 = sand.u32 %s183, 1
        %s649 = smul.addr %s648, 512
        %s650 = scalar_lea.vmem [#allocation6], %s649
        %p651 = pneg %p196
        %p652 = pneg %p193
        %p653 = scmp.lt.s32.totalorder %s38, 2
        %s654 = scalar_select %p653, %s38, 2
        %s655 = smul.addr %s654, 8
        %s656 = scalar_lea.vmem %s6, %s655
        %p657 = pneg %p222
        %p658 = pneg %p219
        %s659 = sand.u32 %s235, 1
        %s660 = scalar_lea.sflag [#allocation8], %s659
        %s661 = sand.u32 %s235, 1
        %s662 = smul.addr %s661, 512
        %s663 = scalar_lea.vmem [#allocation7], %s662
        %p664 = pneg %p248
        %p665 = pneg %p245
        %p666 = scmp.lt.s32.totalorder %s38, 2
        %s667 = scalar_select %p666, %s38, 2
        %s668 = scalar_lea.vmem %s8, %s667
        %p669 = pneg %p274
        %p670 = pneg %p271
        %p671 = scmp.lt.s32.totalorder %s38, 2
        %s672 = scalar_select %p671, %s38, 2
        %s673 = scalar_lea.vmem %s9, %s672
        %p674 = pneg %p300
        %p675 = pneg %p297
        %p676 = scmp.lt.s32.totalorder %s38, 2
        %s677 = scalar_select %p676, %s38, 2
        %s678 = scalar_lea.vmem %s10, %s677
        %p679 = pneg %p326
        %p680 = pneg %p323
        %p681 = scmp.lt.s32.totalorder %s38, 2
        %s682 = scalar_select %p681, %s38, 2
        %s683 = scalar_lea.vmem %s11, %s682
        %p684 = pneg %p352
        %p685 = pneg %p349
        %p686 = scmp.lt.s32.totalorder %s38, 2
        %s687 = scalar_select %p686, %s38, 2
        %s688 = scalar_lea.vmem %s12, %s687
        %p689 = pneg %p378
        %p690 = pneg %p375
        %p691 = pneg %p404
        %p692 = pneg %p401
        %p693 = scmp.lt.s32.totalorder %s37, 1
        %s694 = scalar_select %p693, %s37, 1
        %s695 = smul.addr %s694, 8
        %s696 = scalar_lea.vmem %s13, %s695
        %p697 = scmp.lt.s32.totalorder %s37, 1
        %s698 = scalar_select %p697, %s37, 1
        %s699 = smul.addr %s698, 8
        %s700 = scalar_lea.vmem %s0, %s699
        %p701 = scmp.lt.s32.totalorder %s38, 2
        %s702 = scalar_select %p701, %s38, 2
        %s703 = smul.addr %s702, 3
        %s704 = scalar_lea.vmem %s2, %s703
        %p705 = scmp.lt.s32.totalorder %s38, 2
        %s706 = scalar_select %p705, %s38, 2
        %s707 = scalar_lea.vmem %s4, %s706
        %p708 = scmp.lt.s32.totalorder %s38, 2
        %s709 = scalar_select %p708, %s38, 2
        %s710 = smul.addr %s709, 8
        %s711 = scalar_lea.vmem %s6, %s710
        %p712 = scmp.lt.s32.totalorder %s38, 2
        %s713 = scalar_select %p712, %s38, 2
        %s714 = scalar_lea.vmem %s8, %s713
        %p715 = scmp.lt.s32.totalorder %s38, 2
        %s716 = scalar_select %p715, %s38, 2
        %s717 = scalar_lea.vmem %s9, %s716
        %p718 = scmp.lt.s32.totalorder %s38, 2
        %s719 = scalar_select %p718, %s38, 2
        %s720 = scalar_lea.vmem %s10, %s719
        %p721 = scmp.lt.s32.totalorder %s38, 2
        %s722 = scalar_select %p721, %s38, 2
        %s723 = scalar_lea.vmem %s11, %s722
        %p724 = scmp.lt.s32.totalorder %s38, 2
        %s725 = scalar_select %p724, %s38, 2
        %s726 = scalar_lea.vmem %s12, %s725
        %p727 = scmp.lt.s32.totalorder %s37, 1
        %s728 = scalar_select %p727, %s37, 1
        %s729 = smul.addr %s728, 8
        %s730 = scalar_lea.vmem %s13, %s729
        %p732 = scmp.eq.s32.totalorder %s38, 0
        // Predicated region
        $region89: #{transformer_encoder_forward.1} parent=71 // pred_check
          %p733 = pneg %p732
        $region90: #{transformer_encoder_forward.1} parent=71 // pred_check_branch
          %735 = sbr.rel (%p733) target = $region92
        $region91: #{transformer_encoder_forward.1} parent=71 // pred_region
          %v736 = vld [vmem:[%s700] sm:$0xff]
          %737 = vst [vmem:[%s730] sm:$0xff] %v736
        $region92: #{transformer_encoder_forward.1} parent=71 // pred_fallthru
          _
        %v738 = vld [vmem:[%s730] sm:$0xff]
        %v739 = vpack.c.bf16 %v738, %v738
        %v740 = vld [vmem:[%s579] sm:$0xff]
        %v741 = vld [vmem:[%s579 + $0x8] sm:$0xf]
        %v742 = vld [vmem:[%s579 + $0xc] sm:$0xff]
        %v743 = vld [vmem:[%s579 + $0x14] sm:$0xf]
        %v744 = vld [vmem:[%s579 + $0x18] sm:$0xff]
        %v745 = vld [vmem:[%s579 + $0x20] sm:$0xf]
        %v746 = vld [vmem:[%s579 + $0x24] sm:$0xff]
        %v747 = vld [vmem:[%s579 + $0x2c] sm:$0xf]
        %v748 = vld [vmem:[%s579 + $0x30] sm:$0xff]
        %v749 = vld [vmem:[%s579 + $0x38] sm:$0xf]
        %v750 = vld [vmem:[%s579 + $0x3c] sm:$0xff]
        %v751 = vld [vmem:[%s579 + $0x44] sm:$0xf]
        %v752 = vld [vmem:[%s579 + $0x48] sm:$0xff]
        %v753 = vld [vmem:[%s579 + $0x50] sm:$0xf]
        %v754 = vld [vmem:[%s579 + $0x54] sm:$0xff]
        %v755 = vld [vmem:[%s579 + $0x5c] sm:$0xf]
        %v756 = vld [vmem:[%s579 + $0x60] sm:$0xff]
        %v757 = vld [vmem:[%s579 + $0x68] sm:$0xf]
        %v758 = vld [vmem:[%s579 + $0x6c] sm:$0xff]
        %v759 = vld [vmem:[%s579 + $0x74] sm:$0xf]
        %v760 = vld [vmem:[%s579 + $0x78] sm:$0xff]
        %v761 = vld [vmem:[%s579 + $0x80] sm:$0xf]
        %v762 = vld [vmem:[%s579 + $0x84] sm:$0xff]
        %v763 = vld [vmem:[%s579 + $0x8c] sm:$0xf]
        %v764 = vld [vmem:[%s579 + $0x90] sm:$0xff]
        %v765 = vld [vmem:[%s579 + $0x98] sm:$0xf]
        %v766 = vld [vmem:[%s579 + $0x9c] sm:$0xff]
        %v767 = vld [vmem:[%s579 + $0xa4] sm:$0xf]
        %v768 = vld [vmem:[%s579 + $0xa8] sm:$0xff]
        %v769 = vld [vmem:[%s579 + $0xb0] sm:$0xf]
        %v770 = vld [vmem:[%s579 + $0xb4] sm:$0xff]
        %v771 = vld [vmem:[%s579 + $0xbc] sm:$0xf]
        %v772 = vld [vmem:[%s704] sm:$0x7]
        %v774 = vperm.slane %v772, 0
        %v775 = vperm.slane %v772, 1
        %v776 = vperm.slane %v772, 2
        %v812 = vunpack.c.l.b16 %v740
        %v813 = vunpack.c.h.b16 %v740
        %v814 = vunpack.c.l.b16 %v741
        %v815 = vunpack.c.l.b16 %v742
        %v816 = vunpack.c.h.b16 %v742
        %v817 = vunpack.c.l.b16 %v743
        %v818 = vunpack.c.l.b16 %v744
        %v819 = vunpack.c.h.b16 %v744
        %v820 = vunpack.c.l.b16 %v745
        %v821 = vunpack.c.l.b16 %v746
        %v822 = vunpack.c.h.b16 %v746
        %v823 = vunpack.c.l.b16 %v747
        %v824 = vunpack.c.l.b16 %v748
        %v825 = vunpack.c.h.b16 %v748
        %v826 = vunpack.c.l.b16 %v749
        %v827 = vunpack.c.l.b16 %v750
        %v828 = vunpack.c.h.b16 %v750
        %v829 = vunpack.c.l.b16 %v751
        %v830 = vunpack.c.l.b16 %v752
        %v831 = vunpack.c.h.b16 %v752
        %v832 = vunpack.c.l.b16 %v753
        %v833 = vunpack.c.l.b16 %v754
        %v834 = vunpack.c.h.b16 %v754
        %v835 = vunpack.c.l.b16 %v755
        %v836 = vunpack.c.l.b16 %v756
        %v837 = vunpack.c.h.b16 %v756
        %v838 = vunpack.c.l.b16 %v757
        %v839 = vunpack.c.l.b16 %v758
        %v840 = vunpack.c.h.b16 %v758
        %v841 = vunpack.c.l.b16 %v759
        %v842 = vunpack.c.l.b16 %v760
        %v843 = vunpack.c.h.b16 %v760
        %v844 = vunpack.c.l.b16 %v761
        %v845 = vunpack.c.l.b16 %v762
        %v846 = vunpack.c.h.b16 %v762
        %v847 = vunpack.c.l.b16 %v763
        %v848 = vunpack.c.l.b16 %v764
        %v849 = vunpack.c.h.b16 %v764
        %v850 = vunpack.c.l.b16 %v765
        %v851 = vunpack.c.l.b16 %v766
        %v852 = vunpack.c.h.b16 %v766
        %v853 = vunpack.c.l.b16 %v767
        %v854 = vunpack.c.l.b16 %v768
        %v855 = vunpack.c.h.b16 %v768
        %v856 = vunpack.c.l.b16 %v769
        %v857 = vunpack.c.l.b16 %v770
        %v858 = vunpack.c.h.b16 %v770
        %v859 = vunpack.c.l.b16 %v771
        %v860 = vpack.c.b16 %v815, %v812
        %v861 = vpack.c.b16 %v816, %v813
        %v862 = vpack.c.b16 %v817, %v814
        %v863 = vpack.c.b16 %v821, %v818
        %v864 = vpack.c.b16 %v822, %v819
        %v865 = vpack.c.b16 %v823, %v820
        %v866 = vpack.c.b16 %v827, %v824
        %v867 = vpack.c.b16 %v828, %v825
        %v868 = vpack.c.b16 %v829, %v826
        %v869 = vpack.c.b16 %v833, %v830
        %v870 = vpack.c.b16 %v834, %v831
        %v871 = vpack.c.b16 %v835, %v832
        %v872 = vpack.c.b16 %v839, %v836
        %v873 = vpack.c.b16 %v840, %v837
        %v874 = vpack.c.b16 %v841, %v838
        %v875 = vpack.c.b16 %v845, %v842
        %v876 = vpack.c.b16 %v846, %v843
        %v877 = vpack.c.b16 %v847, %v844
        %v878 = vpack.c.b16 %v851, %v848
        %v879 = vpack.c.b16 %v852, %v849
        %v880 = vpack.c.b16 %v853, %v850
        %v881 = vpack.c.b16 %v857, %v854
        %v882 = vpack.c.b16 %v858, %v855
        %v883 = vpack.c.b16 %v859, %v856
        %908 = vmatpush.bf16.msra.mxu0 %v881
        %909 = vmatpush.bf16.msra.mxu0 %v878
        %910 = vmatpush.bf16.msra.mxu0 %v875
        %911 = vmatpush.bf16.msra.mxu0 %v872
        %912 = vmatpush.bf16.msra.mxu0 %v869
        %913 = vmatpush.bf16.msra.mxu0 %v866
        %914 = vmatpush.bf16.msra.mxu0 %v863
        %915 = vmatpush.bf16.msra.mxu0 %v860
        %916 = vmatmul.bf16.gmra.mxu0 %v739
        %v917 = vpop.f32.mrf.mxu0
        %v918 = vadd.f32 %v774, %v917
        %v919 = vpop.f32.mrf.mxu0
        %920 = vdwg.mxu0
        %921 = vmatpush.bf16.msra.mxu0 %v882
        %922 = vmatpush.bf16.msra.mxu0 %v879
        %923 = vmatpush.bf16.msra.mxu0 %v876
        %924 = vmatpush.bf16.msra.mxu0 %v873
        %925 = vmatpush.bf16.msra.mxu0 %v870
        %926 = vmatpush.bf16.msra.mxu0 %v867
        %927 = vmatpush.bf16.msra.mxu0 %v864
        %928 = vmatpush.bf16.msra.mxu0 %v861
        %929 = vmatmul.bf16.gmra.mxu0 %v739
        %v930 = vpop.f32.mrf.mxu0
        %v931 = vadd.f32 %v775, %v930
        %v932 = vpop.f32.mrf.mxu0
        %933 = vdwg.mxu0
        %934 = vmatpush.bf16.msra.mxu0 %v883
        %935 = vmatpush.bf16.msra.mxu0 %v880
        %936 = vmatpush.bf16.msra.mxu0 %v877
        %937 = vmatpush.bf16.msra.mxu0 %v874
        %938 = vmatpush.bf16.msra.mxu0 %v871
        %939 = vmatpush.bf16.msra.mxu0 %v868
        %940 = vmatpush.bf16.msra.mxu0 %v865
        %941 = vmatpush.bf16.msra.mxu0 %v862
        %942 = vmatmul.bf16.gmra.mxu0 %v739
        %v943 = vpop.f32.mrf.mxu0
        %v944 = vadd.f32 %v776, %v943
        %v945 = vpop.f32.mrf.mxu0
        %946 = vdwg.mxu0
        %v947 = vmul.f32 %v918, 0.17677669
        %v948 = vpack.c.bf16 %v947, %v947
        %v949 = vpack.c.bf16 %v931, %v931
        %vm950 = vcmask 261120
        %v952 = vsel %vm950, %v948, 0
        %v955 = vsel %vm950, %v949, 0
        %957 = vmatpush.bf16.xpose.msra.mxu0 0
        %958 = vmatpush.bf16.xpose.msra.mxu0 0
        %959 = vmatpush.bf16.xpose.msra.mxu0 0
        %960 = vmatpush.bf16.xpose.msra.mxu0 0
        %961 = vmatpush.bf16.xpose.msra.mxu0 0
        %962 = vmatpush.bf16.xpose.msra.mxu0 0
        %963 = vmatpush.bf16.xpose.msra.mxu0 0
        %964 = vmatpush.bf16.xpose.msra.mxu0 %v955
        %965 = vmatmul.bf16.gmra.mxu0 %v952
        %v966 = vpop.f32.mrf.mxu0
        %v967 = vadd.f32 0.0, %v966
        %v968 = vpop.f32.mrf.mxu0
        %969 = vdwg.mxu0
        %vm970 = vcmask 64512
        %v971 = vsel %vm970, %v967, -inf
        %972 = vmax.xlane.f32.xlu0 %v971
        %v973 = vpop.xlane.xlu0 %972
        %v974 = vsub.f32 %v967, %v973
        %v975 = vmul.f32 %v974, 1.442695
        %v976 = vpow.pop %v975
        %v977 = vsel %vm970, %v976, 0.0
        %978 = vadd.xlane.f32.xlu0 %v977
        %v979 = vpop.xlane.xlu0 %978
        %v980 = vrcp.pop %v979
        %v981 = vmul.f32 %v976, %v980
        %v983 = vsel %vm970, %v981, 0
        %985 = vmatpush.msra.mxu0 0.0
        %986 = vmatpush.msra.mxu0 0.0
        %987 = vmatpush.msra.mxu0 0.0
        %988 = vmatpush.msra.mxu0 0.0
        %989 = vmatpush.msra.mxu0 0.0
        %990 = vmatpush.msra.mxu0 0.0
        %991 = vmatpush.msra.mxu0 0.0
        %992 = vmatpush.msra.mxu0 0.0
        %993 = vmatpush.msra.mxu0 0.0
        %994 = vmatpush.msra.mxu0 0.0
        %995 = vmatpush.msra.mxu0 0.0
        %996 = vmatpush.msra.mxu0 0.0
        %997 = vmatpush.msra.mxu0 0.0
        %998 = vmatpush.msra.mxu0 0.0
        %999 = vmatpush.msra.mxu0 0.0
        %1000 = vmatpush.msra.mxu0 %v944
        %1001 = vmatmul.f32.gmra.mxu0 %v983
        %v1002 = vpop.f32.mrf.mxu0
        %v1003 = vadd.f32 0.0, %v1002
        %1004 = vdwg.mxu0
        %1006 = vrot.lane.b32.xlu0 %v948, 96
        %v1007 = vpop.permute.xlu0 %1006
        %1009 = vrot.lane.b32.xlu0 %v949, 96
        %v1010 = vpop.permute.xlu0 %1009
        %v1012 = vsel %vm950, %v1007, 0
        %v1015 = vsel %vm950, %v1010, 0
        %1017 = vmatpush.bf16.xpose.msra.mxu0 0
        %1018 = vmatpush.bf16.xpose.msra.mxu0 0
        %1019 = vmatpush.bf16.xpose.msra.mxu0 0
        %1020 = vmatpush.bf16.xpose.msra.mxu0 0
        %1021 = vmatpush.bf16.xpose.msra.mxu0 0
        %1022 = vmatpush.bf16.xpose.msra.mxu0 0
        %1023 = vmatpush.bf16.xpose.msra.mxu0 0
        %1024 = vmatpush.bf16.xpose.msra.mxu0 %v1015
        %1025 = vmatmul.bf16.gmra.mxu0 %v1012
        %v1026 = vpop.f32.mrf.mxu0
        %v1027 = vadd.f32 0.0, %v1026
        %v1028 = vpop.f32.mrf.mxu0
        %1029 = vdwg.mxu0
        %v1030 = vsel %vm970, %v1027, -inf
        %1031 = vmax.xlane.f32.xlu0 %v1030
        %v1032 = vpop.xlane.xlu0 %1031
        %v1033 = vsub.f32 %v1027, %v1032
        %v1034 = vmul.f32 %v1033, 1.442695
        %v1035 = vpow.pop %v1034
        %v1036 = vsel %vm970, %v1035, 0.0
        %1037 = vadd.xlane.f32.xlu0 %v1036
        %v1038 = vpop.xlane.xlu0 %1037
        %v1039 = vrcp.pop %v1038
        %v1040 = vmul.f32 %v1035, %v1039
        %1042 = vrot.lane.b32.xlu0 %v944, 96
        %v1043 = vpop.permute.xlu0 %1042
        %v1046 = vsel %vm970, %v1040, 0
        %1048 = vmatpush.msra.mxu0 0.0
        %1049 = vmatpush.msra.mxu0 0.0
        %1050 = vmatpush.msra.mxu0 0.0
        %1051 = vmatpush.msra.mxu0 0.0
        %1052 = vmatpush.msra.mxu0 0.0
        %1053 = vmatpush.msra.mxu0 0.0
        %1054 = vmatpush.msra.mxu0 0.0
        %1055 = vmatpush.msra.mxu0 0.0
        %1056 = vmatpush.msra.mxu0 0.0
        %1057 = vmatpush.msra.mxu0 0.0
        %1058 = vmatpush.msra.mxu0 0.0
        %1059 = vmatpush.msra.mxu0 0.0
        %1060 = vmatpush.msra.mxu0 0.0
        %1061 = vmatpush.msra.mxu0 0.0
        %1062 = vmatpush.msra.mxu0 0.0
        %1063 = vmatpush.msra.mxu0 %v1043
        %1064 = vmatmul.f32.gmra.mxu0 %v1046
        %v1065 = vpop.f32.mrf.mxu0
        %v1066 = vadd.f32 0.0, %v1065
        %1067 = vdwg.mxu0
        %1068 = vrot.lane.b32.xlu0 %v948, 64
        %v1069 = vpop.permute.xlu0 %1068
        %1070 = vrot.lane.b32.xlu0 %v949, 64
        %v1071 = vpop.permute.xlu0 %1070
        %v1073 = vsel %vm950, %v1069, 0
        %v1076 = vsel %vm950, %v1071, 0
        %1078 = vmatpush.bf16.xpose.msra.mxu0 0
        %1079 = vmatpush.bf16.xpose.msra.mxu0 0
        %1080 = vmatpush.bf16.xpose.msra.mxu0 0
        %1081 = vmatpush.bf16.xpose.msra.mxu0 0
        %1082 = vmatpush.bf16.xpose.msra.mxu0 0
        %1083 = vmatpush.bf16.xpose.msra.mxu0 0
        %1084 = vmatpush.bf16.xpose.msra.mxu0 0
        %1085 = vmatpush.bf16.xpose.msra.mxu0 %v1076
        %1086 = vmatmul.bf16.gmra.mxu0 %v1073
        %v1087 = vpop.f32.mrf.mxu0
        %v1088 = vadd.f32 0.0, %v1087
        %v1089 = vpop.f32.mrf.mxu0
        %1090 = vdwg.mxu0
        %v1091 = vsel %vm970, %v1088, -inf
        %1092 = vmax.xlane.f32.xlu0 %v1091
        %v1093 = vpop.xlane.xlu0 %1092
        %v1094 = vsub.f32 %v1088, %v1093
        %v1095 = vmul.f32 %v1094, 1.442695
        %v1096 = vpow.pop %v1095
        %v1097 = vsel %vm970, %v1096, 0.0
        %1098 = vadd.xlane.f32.xlu0 %v1097
        %v1099 = vpop.xlane.xlu0 %1098
        %v1100 = vrcp.pop %v1099
        %v1101 = vmul.f32 %v1096, %v1100
        %1102 = vrot.lane.b32.xlu0 %v944, 64
        %v1103 = vpop.permute.xlu0 %1102
        %v1106 = vsel %vm970, %v1101, 0
        %1108 = vmatpush.msra.mxu0 0.0
        %1109 = vmatpush.msra.mxu0 0.0
        %1110 = vmatpush.msra.mxu0 0.0
        %1111 = vmatpush.msra.mxu0 0.0
        %1112 = vmatpush.msra.mxu0 0.0
        %1113 = vmatpush.msra.mxu0 0.0
        %1114 = vmatpush.msra.mxu0 0.0
        %1115 = vmatpush.msra.mxu0 0.0
        %1116 = vmatpush.msra.mxu0 0.0
        %1117 = vmatpush.msra.mxu0 0.0
        %1118 = vmatpush.msra.mxu0 0.0
        %1119 = vmatpush.msra.mxu0 0.0
        %1120 = vmatpush.msra.mxu0 0.0
        %1121 = vmatpush.msra.mxu0 0.0
        %1122 = vmatpush.msra.mxu0 0.0
        %1123 = vmatpush.msra.mxu0 %v1103
        %1124 = vmatmul.f32.gmra.mxu0 %v1106
        %v1125 = vpop.f32.mrf.mxu0
        %v1126 = vadd.f32 0.0, %v1125
        %1127 = vdwg.mxu0
        %1128 = vrot.lane.b32.xlu0 %v948, 32
        %v1129 = vpop.permute.xlu0 %1128
        %1130 = vrot.lane.b32.xlu0 %v949, 32
        %v1131 = vpop.permute.xlu0 %1130
        %v1133 = vsel %vm950, %v1129, 0
        %v1136 = vsel %vm950, %v1131, 0
        %1138 = vmatpush.bf16.xpose.msra.mxu0 0
        %1139 = vmatpush.bf16.xpose.msra.mxu0 0
        %1140 = vmatpush.bf16.xpose.msra.mxu0 0
        %1141 = vmatpush.bf16.xpose.msra.mxu0 0
        %1142 = vmatpush.bf16.xpose.msra.mxu0 0
        %1143 = vmatpush.bf16.xpose.msra.mxu0 0
        %1144 = vmatpush.bf16.xpose.msra.mxu0 0
        %1145 = vmatpush.bf16.xpose.msra.mxu0 %v1136
        %1146 = vmatmul.bf16.gmra.mxu0 %v1133
        %v1147 = vpop.f32.mrf.mxu0
        %v1148 = vadd.f32 0.0, %v1147
        %v1149 = vpop.f32.mrf.mxu0
        %1150 = vdwg.mxu0
        %v1151 = vsel %vm970, %v1148, -inf
        %1152 = vmax.xlane.f32.xlu0 %v1151
        %v1153 = vpop.xlane.xlu0 %1152
        %v1154 = vsub.f32 %v1148, %v1153
        %v1155 = vmul.f32 %v1154, 1.442695
        %v1156 = vpow.pop %v1155
        %v1157 = vsel %vm970, %v1156, 0.0
        %1158 = vadd.xlane.f32.xlu0 %v1157
        %v1159 = vpop.xlane.xlu0 %1158
        %v1160 = vrcp.pop %v1159
        %v1161 = vmul.f32 %v1156, %v1160
        %1162 = vrot.lane.b32.xlu0 %v944, 32
        %v1163 = vpop.permute.xlu0 %1162
        %v1166 = vsel %vm970, %v1161, 0
        %1168 = vmatpush.msra.mxu0 0.0
        %1169 = vmatpush.msra.mxu0 0.0
        %1170 = vmatpush.msra.mxu0 0.0
        %1171 = vmatpush.msra.mxu0 0.0
        %1172 = vmatpush.msra.mxu0 0.0
        %1173 = vmatpush.msra.mxu0 0.0
        %1174 = vmatpush.msra.mxu0 0.0
        %1175 = vmatpush.msra.mxu0 0.0
        %1176 = vmatpush.msra.mxu0 0.0
        %1177 = vmatpush.msra.mxu0 0.0
        %1178 = vmatpush.msra.mxu0 0.0
        %1179 = vmatpush.msra.mxu0 0.0
        %1180 = vmatpush.msra.mxu0 0.0
        %1181 = vmatpush.msra.mxu0 0.0
        %1182 = vmatpush.msra.mxu0 0.0
        %1183 = vmatpush.msra.mxu0 %v1163
        %1184 = vmatmul.f32.gmra.mxu0 %v1166
        %v1185 = vpop.f32.mrf.mxu0
        %v1186 = vadd.f32 0.0, %v1185
        %1187 = vdwg.mxu0
        %1189 = vrot.lane.b32.xlu0 %v1066, 32
        %v1190 = vpop.permute.xlu0 %1189
        %1193 = vrot.lane.b32.xlu0 %v1126, 64
        %v1194 = vpop.permute.xlu0 %1193
        %1197 = vrot.lane.b32.xlu0 %v1186, 96
        %v1198 = vpop.permute.xlu0 %1197
        %v1200 = vsel %vm950, %v1003, %v1190
        %vm1201 = vcmask 523264
        %v1202 = vsel %vm1201, %v1200, %v1194
        %vm1203 = vcmask 785408
        %v1204 = vsel %vm1203, %v1202, %v1198
        %v1205 = vpack.c.bf16 %v1204, %v1204
        %v1206 = vld [vmem:[%s589] sm:$0xf]
        %v1207 = vld [vmem:[%s589 + $0x4] sm:$0xf]
        %v1208 = vld [vmem:[%s589 + $0x8] sm:$0xf]
        %v1209 = vld [vmem:[%s589 + $0xc] sm:$0xf]
        %v1210 = vld [vmem:[%s589 + $0x10] sm:$0xf]
        %v1211 = vld [vmem:[%s589 + $0x14] sm:$0xf]
        %v1212 = vld [vmem:[%s589 + $0x18] sm:$0xf]
        %v1213 = vld [vmem:[%s589 + $0x1c] sm:$0xf]
        %v1214 = vld [vmem:[%s589 + $0x20] sm:$0xf]
        %v1215 = vld [vmem:[%s589 + $0x24] sm:$0xf]
        %v1216 = vld [vmem:[%s589 + $0x28] sm:$0xf]
        %v1217 = vld [vmem:[%s589 + $0x2c] sm:$0xf]
        %v1218 = vld [vmem:[%s589 + $0x30] sm:$0xf]
        %v1219 = vld [vmem:[%s589 + $0x34] sm:$0xf]
        %v1220 = vld [vmem:[%s589 + $0x38] sm:$0xf]
        %v1221 = vld [vmem:[%s589 + $0x3c] sm:$0xf]
        %v1222 = vld [vmem:[%s707] sm:$0x1]
        %v1224 = vperm.slane %v1222, 0
        %v1242 = vunpack.c.l.b16 %v1206
        %v1243 = vunpack.c.l.b16 %v1207
        %v1244 = vunpack.c.l.b16 %v1208
        %v1245 = vunpack.c.l.b16 %v1209
        %v1246 = vunpack.c.l.b16 %v1210
        %v1247 = vunpack.c.l.b16 %v1211
        %v1248 = vunpack.c.l.b16 %v1212
        %v1249 = vunpack.c.l.b16 %v1213
        %v1250 = vunpack.c.l.b16 %v1214
        %v1251 = vunpack.c.l.b16 %v1215
        %v1252 = vunpack.c.l.b16 %v1216
        %v1253 = vunpack.c.l.b16 %v1217
        %v1254 = vunpack.c.l.b16 %v1218
        %v1255 = vunpack.c.l.b16 %v1219
        %v1256 = vunpack.c.l.b16 %v1220
        %v1257 = vunpack.c.l.b16 %v1221
        %v1258 = vpack.c.b16 %v1243, %v1242
        %v1259 = vpack.c.b16 %v1245, %v1244
        %v1260 = vpack.c.b16 %v1247, %v1246
        %v1261 = vpack.c.b16 %v1249, %v1248
        %v1262 = vpack.c.b16 %v1251, %v1250
        %v1263 = vpack.c.b16 %v1253, %v1252
        %v1264 = vpack.c.b16 %v1255, %v1254
        %v1265 = vpack.c.b16 %v1257, %v1256
        %1274 = vmatpush.bf16.msra.mxu0 %v1265
        %1275 = vmatpush.bf16.msra.mxu0 %v1264
        %1276 = vmatpush.bf16.msra.mxu0 %v1263
        %1277 = vmatpush.bf16.msra.mxu0 %v1262
        %1278 = vmatpush.bf16.msra.mxu0 %v1261
        %1279 = vmatpush.bf16.msra.mxu0 %v1260
        %1280 = vmatpush.bf16.msra.mxu0 %v1259
        %1281 = vmatpush.bf16.msra.mxu0 %v1258
        %1282 = vmatmul.bf16.gmra.mxu0 %v1205
        %v1283 = vpop.f32.mrf.mxu0
        %v1284 = vadd.f32 %v1224, %v1283
        %v1285 = vpop.f32.mrf.mxu0
        %1286 = vdwg.mxu0
        %v1287 = vadd.f32 %v738, %v1284
        %v1288 = vld [vmem:[%s717] sm:$0x1]
        %v1289 = vld [vmem:[%s720] sm:$0x1]
        %1290 = vadd.xlane.f32.xlu0 %v1287
        %v1291 = vpop.xlane.xlu0 %1290
        %v1292 = vrcp.pop 128.0
        %v1293 = vmul.f32 128.0, %v1292
        %v1294 = vsub.f32 1.0, %v1293
        %v1295 = vmul.f32 %v1292, %v1294
        %v1296 = vadd.f32 %v1292, %v1295
        %vm1297 = vweird.f32 %v1292
        %v1298 = vsel %vm1297, %v1292, %v1296
        %v1299 = vmul.f32 %v1291, %v1298
        %v1300 = vsub.f32 %v1287, %v1299
        %v1301 = vmul.f32 %v1300, %v1300
        %1302 = vadd.xlane.f32.xlu0 %v1301
        %v1303 = vpop.xlane.xlu0 %1302
        %v1304 = vmul.f32 %v1303, %v1298
        %v1305 = vadd.f32 %v1304, 1e-05
        %v1306 = vrsqrt.pop %v1305
        %v1307 = vmul.f32 %v1306, %v1305
        %v1308 = vmul.f32 %v1307, %v1306
        %v1309 = vmul.f32 0.5, %v1308
        %v1310 = vsub.f32 1.5, %v1309
        %v1311 = vmul.f32 %v1306, %v1310
        %vm1312 = vweird.f32 %v1305
        %vm1313 = vweird.f32 %v1306
        %vm1314 = vmor %vm1312, %vm1313
        %v1315 = vsel %vm1314, %v1306, %v1311
        %v1316 = vmul.f32 %v1300, %v1315
        %v1318 = vperm.slane %v1288, 0
        %v1320 = vmul.f32 %v1316, %v1318
        %v1322 = vperm.slane %v1289, 0
        %v1324 = vadd.f32 %v1320, %v1322
        %v1325 = vpack.c.bf16 %v1324, %v1324
        %v1326 = vld [vmem:[%s599] sm:$0xff]
        %v1327 = vld [vmem:[%s599 + $0x8] sm:$0xff]
        %v1328 = vld [vmem:[%s599 + $0x10] sm:$0xff]
        %v1329 = vld [vmem:[%s599 + $0x18] sm:$0xff]
        %v1330 = vld [vmem:[%s599 + $0x20] sm:$0xff]
        %v1331 = vld [vmem:[%s599 + $0x28] sm:$0xff]
        %v1332 = vld [vmem:[%s599 + $0x30] sm:$0xff]
        %v1333 = vld [vmem:[%s599 + $0x38] sm:$0xff]
        %v1334 = vld [vmem:[%s599 + $0x40] sm:$0xff]
        %v1335 = vld [vmem:[%s599 + $0x48] sm:$0xff]
        %v1336 = vld [vmem:[%s599 + $0x50] sm:$0xff]
        %v1337 = vld [vmem:[%s599 + $0x58] sm:$0xff]
        %v1338 = vld [vmem:[%s599 + $0x60] sm:$0xff]
        %v1339 = vld [vmem:[%s599 + $0x68] sm:$0xff]
        %v1340 = vld [vmem:[%s599 + $0x70] sm:$0xff]
        %v1341 = vld [vmem:[%s599 + $0x78] sm:$0xff]
        %v1342 = vld [vmem:[%s599 + $0x80] sm:$0xff]
        %v1343 = vld [vmem:[%s599 + $0x88] sm:$0xff]
        %v1344 = vld [vmem:[%s599 + $0x90] sm:$0xff]
        %v1345 = vld [vmem:[%s599 + $0x98] sm:$0xff]
        %v1346 = vld [vmem:[%s599 + $0xa0] sm:$0xff]
        %v1347 = vld [vmem:[%s599 + $0xa8] sm:$0xff]
        %v1348 = vld [vmem:[%s599 + $0xb0] sm:$0xff]
        %v1349 = vld [vmem:[%s599 + $0xb8] sm:$0xff]
        %v1350 = vld [vmem:[%s599 + $0xc0] sm:$0xff]
        %v1351 = vld [vmem:[%s599 + $0xc8] sm:$0xff]
        %v1352 = vld [vmem:[%s599 + $0xd0] sm:$0xff]
        %v1353 = vld [vmem:[%s599 + $0xd8] sm:$0xff]
        %v1354 = vld [vmem:[%s599 + $0xe0] sm:$0xff]
        %v1355 = vld [vmem:[%s599 + $0xe8] sm:$0xff]
        %v1356 = vld [vmem:[%s599 + $0xf0] sm:$0xff]
        %v1357 = vld [vmem:[%s599 + $0xf8] sm:$0xff]
        %v1358 = vld [vmem:[%s599 + $0x100] sm:$0xff]
        %v1359 = vld [vmem:[%s599 + $0x108] sm:$0xff]
        %v1360 = vld [vmem:[%s599 + $0x110] sm:$0xff]
        %v1361 = vld [vmem:[%s599 + $0x118] sm:$0xff]
        %v1362 = vld [vmem:[%s599 + $0x120] sm:$0xff]
        %v1363 = vld [vmem:[%s599 + $0x128] sm:$0xff]
        %v1364 = vld [vmem:[%s599 + $0x130] sm:$0xff]
        %v1365 = vld [vmem:[%s599 + $0x138] sm:$0xff]
        %v1366 = vld [vmem:[%s599 + $0x140] sm:$0xff]
        %v1367 = vld [vmem:[%s599 + $0x148] sm:$0xff]
        %v1368 = vld [vmem:[%s599 + $0x150] sm:$0xff]
        %v1369 = vld [vmem:[%s599 + $0x158] sm:$0xff]
        %v1370 = vld [vmem:[%s599 + $0x160] sm:$0xff]
        %v1371 = vld [vmem:[%s599 + $0x168] sm:$0xff]
        %v1372 = vld [vmem:[%s599 + $0x170] sm:$0xff]
        %v1373 = vld [vmem:[%s599 + $0x178] sm:$0xff]
        %v1374 = vld [vmem:[%s599 + $0x180] sm:$0xff]
        %v1375 = vld [vmem:[%s599 + $0x188] sm:$0xff]
        %v1376 = vld [vmem:[%s599 + $0x190] sm:$0xff]
        %v1377 = vld [vmem:[%s599 + $0x198] sm:$0xff]
        %v1378 = vld [vmem:[%s599 + $0x1a0] sm:$0xff]
        %v1379 = vld [vmem:[%s599 + $0x1a8] sm:$0xff]
        %v1380 = vld [vmem:[%s599 + $0x1b0] sm:$0xff]
        %v1381 = vld [vmem:[%s599 + $0x1b8] sm:$0xff]
        %v1382 = vld [vmem:[%s599 + $0x1c0] sm:$0xff]
        %v1383 = vld [vmem:[%s599 + $0x1c8] sm:$0xff]
        %v1384 = vld [vmem:[%s599 + $0x1d0] sm:$0xff]
        %v1385 = vld [vmem:[%s599 + $0x1d8] sm:$0xff]
        %v1386 = vld [vmem:[%s599 + $0x1e0] sm:$0xff]
        %v1387 = vld [vmem:[%s599 + $0x1e8] sm:$0xff]
        %v1388 = vld [vmem:[%s599 + $0x1f0] sm:$0xff]
        %v1389 = vld [vmem:[%s599 + $0x1f8] sm:$0xff]
        %v1390 = vld [vmem:[%s711] sm:$0xff]
        %v1392 = vperm.slane %v1390, 0
        %v1393 = vperm.slane %v1390, 1
        %v1394 = vperm.slane %v1390, 2
        %v1395 = vperm.slane %v1390, 3
        %v1396 = vperm.slane %v1390, 4
        %v1397 = vperm.slane %v1390, 5
        %v1398 = vperm.slane %v1390, 6
        %v1399 = vperm.slane %v1390, 7
        %v1472 = vunpack.c.l.b16 %v1326
        %v1473 = vunpack.c.h.b16 %v1326
        %v1474 = vunpack.c.l.b16 %v1327
        %v1475 = vunpack.c.h.b16 %v1327
        %v1476 = vunpack.c.l.b16 %v1328
        %v1477 = vunpack.c.h.b16 %v1328
        %v1478 = vunpack.c.l.b16 %v1329
        %v1479 = vunpack.c.h.b16 %v1329
        %v1480 = vunpack.c.l.b16 %v1330
        %v1481 = vunpack.c.h.b16 %v1330
        %v1482 = vunpack.c.l.b16 %v1331
        %v1483 = vunpack.c.h.b16 %v1331
        %v1484 = vunpack.c.l.b16 %v1332
        %v1485 = vunpack.c.h.b16 %v1332
        %v1486 = vunpack.c.l.b16 %v1333
        %v1487 = vunpack.c.h.b16 %v1333
        %v1488 = vunpack.c.l.b16 %v1334
        %v1489 = vunpack.c.h.b16 %v1334
        %v1490 = vunpack.c.l.b16 %v1335
        %v1491 = vunpack.c.h.b16 %v1335
        %v1492 = vunpack.c.l.b16 %v1336
        %v1493 = vunpack.c.h.b16 %v1336
        %v1494 = vunpack.c.l.b16 %v1337
        %v1495 = vunpack.c.h.b16 %v1337
        %v1496 = vunpack.c.l.b16 %v1338
        %v1497 = vunpack.c.h.b16 %v1338
        %v1498 = vunpack.c.l.b16 %v1339
        %v1499 = vunpack.c.h.b16 %v1339
        %v1500 = vunpack.c.l.b16 %v1340
        %v1501 = vunpack.c.h.b16 %v1340
        %v1502 = vunpack.c.l.b16 %v1341
        %v1503 = vunpack.c.h.b16 %v1341
        %v1504 = vunpack.c.l.b16 %v1342
        %v1505 = vunpack.c.h.b16 %v1342
        %v1506 = vunpack.c.l.b16 %v1343
        %v1507 = vunpack.c.h.b16 %v1343
        %v1508 = vunpack.c.l.b16 %v1344
        %v1509 = vunpack.c.h.b16 %v1344
        %v1510 = vunpack.c.l.b16 %v1345
        %v1511 = vunpack.c.h.b16 %v1345
        %v1512 = vunpack.c.l.b16 %v1346
        %v1513 = vunpack.c.h.b16 %v1346
        %v1514 = vunpack.c.l.b16 %v1347
        %v1515 = vunpack.c.h.b16 %v1347
        %v1516 = vunpack.c.l.b16 %v1348
        %v1517 = vunpack.c.h.b16 %v1348
        %v1518 = vunpack.c.l.b16 %v1349
        %v1519 = vunpack.c.h.b16 %v1349
        %v1520 = vunpack.c.l.b16 %v1350
        %v1521 = vunpack.c.h.b16 %v1350
        %v1522 = vunpack.c.l.b16 %v1351
        %v1523 = vunpack.c.h.b16 %v1351
        %v1524 = vunpack.c.l.b16 %v1352
        %v1525 = vunpack.c.h.b16 %v1352
        %v1526 = vunpack.c.l.b16 %v1353
        %v1527 = vunpack.c.h.b16 %v1353
        %v1528 = vunpack.c.l.b16 %v1354
        %v1529 = vunpack.c.h.b16 %v1354
        %v1530 = vunpack.c.l.b16 %v1355
        %v1531 = vunpack.c.h.b16 %v1355
        %v1532 = vunpack.c.l.b16 %v1356
        %v1533 = vunpack.c.h.b16 %v1356
        %v1534 = vunpack.c.l.b16 %v1357
        %v1535 = vunpack.c.h.b16 %v1357
        %v1536 = vunpack.c.l.b16 %v1358
        %v1537 = vunpack.c.h.b16 %v1358
        %v1538 = vunpack.c.l.b16 %v1359
        %v1539 = vunpack.c.h.b16 %v1359
        %v1540 = vunpack.c.l.b16 %v1360
        %v1541 = vunpack.c.h.b16 %v1360
        %v1542 = vunpack.c.l.b16 %v1361
        %v1543 = vunpack.c.h.b16 %v1361
        %v1544 = vunpack.c.l.b16 %v1362
        %v1545 = vunpack.c.h.b16 %v1362
        %v1546 = vunpack.c.l.b16 %v1363
        %v1547 = vunpack.c.h.b16 %v1363
        %v1548 = vunpack.c.l.b16 %v1364
        %v1549 = vunpack.c.h.b16 %v1364
        %v1550 = vunpack.c.l.b16 %v1365
        %v1551 = vunpack.c.h.b16 %v1365
        %v1552 = vunpack.c.l.b16 %v1366
        %v1553 = vunpack.c.h.b16 %v1366
        %v1554 = vunpack.c.l.b16 %v1367
        %v1555 = vunpack.c.h.b16 %v1367
        %v1556 = vunpack.c.l.b16 %v1368
        %v1557 = vunpack.c.h.b16 %v1368
        %v1558 = vunpack.c.l.b16 %v1369
        %v1559 = vunpack.c.h.b16 %v1369
        %v1560 = vunpack.c.l.b16 %v1370
        %v1561 = vunpack.c.h.b16 %v1370
        %v1562 = vunpack.c.l.b16 %v1371
        %v1563 = vunpack.c.h.b16 %v1371
        %v1564 = vunpack.c.l.b16 %v1372
        %v1565 = vunpack.c.h.b16 %v1372
        %v1566 = vunpack.c.l.b16 %v1373
        %v1567 = vunpack.c.h.b16 %v1373
        %v1568 = vunpack.c.l.b16 %v1374
        %v1569 = vunpack.c.h.b16 %v1374
        %v1570 = vunpack.c.l.b16 %v1375
        %v1571 = vunpack.c.h.b16 %v1375
        %v1572 = vunpack.c.l.b16 %v1376
        %v1573 = vunpack.c.h.b16 %v1376
        %v1574 = vunpack.c.l.b16 %v1377
        %v1575 = vunpack.c.h.b16 %v1377
        %v1576 = vunpack.c.l.b16 %v1378
        %v1577 = vunpack.c.h.b16 %v1378
        %v1578 = vunpack.c.l.b16 %v1379
        %v1579 = vunpack.c.h.b16 %v1379
        %v1580 = vunpack.c.l.b16 %v1380
        %v1581 = vunpack.c.h.b16 %v1380
        %v1582 = vunpack.c.l.b16 %v1381
        %v1583 = vunpack.c.h.b16 %v1381
        %v1584 = vunpack.c.l.b16 %v1382
        %v1585 = vunpack.c.h.b16 %v1382
        %v1586 = vunpack.c.l.b16 %v1383
        %v1587 = vunpack.c.h.b16 %v1383
        %v1588 = vunpack.c.l.b16 %v1384
        %v1589 = vunpack.c.h.b16 %v1384
        %v1590 = vunpack.c.l.b16 %v1385
        %v1591 = vunpack.c.h.b16 %v1385
        %v1592 = vunpack.c.l.b16 %v1386
        %v1593 = vunpack.c.h.b16 %v1386
        %v1594 = vunpack.c.l.b16 %v1387
        %v1595 = vunpack.c.h.b16 %v1387
        %v1596 = vunpack.c.l.b16 %v1388
        %v1597 = vunpack.c.h.b16 %v1388
        %v1598 = vunpack.c.l.b16 %v1389
        %v1599 = vunpack.c.h.b16 %v1389
        %v1600 = vpack.c.b16 %v1480, %v1472
        %v1601 = vpack.c.b16 %v1481, %v1473
        %v1602 = vpack.c.b16 %v1482, %v1474
        %v1603 = vpack.c.b16 %v1483, %v1475
        %v1604 = vpack.c.b16 %v1484, %v1476
        %v1605 = vpack.c.b16 %v1485, %v1477
        %v1606 = vpack.c.b16 %v1486, %v1478
        %v1607 = vpack.c.b16 %v1487, %v1479
        %v1608 = vpack.c.b16 %v1496, %v1488
        %v1609 = vpack.c.b16 %v1497, %v1489
        %v1610 = vpack.c.b16 %v1498, %v1490
        %v1611 = vpack.c.b16 %v1499, %v1491
        %v1612 = vpack.c.b16 %v1500, %v1492
        %v1613 = vpack.c.b16 %v1501, %v1493
        %v1614 = vpack.c.b16 %v1502, %v1494
        %v1615 = vpack.c.b16 %v1503, %v1495
        %v1616 = vpack.c.b16 %v1512, %v1504
        %v1617 = vpack.c.b16 %v1513, %v1505
        %v1618 = vpack.c.b16 %v1514, %v1506
        %v1619 = vpack.c.b16 %v1515, %v1507
        %v1620 = vpack.c.b16 %v1516, %v1508
        %v1621 = vpack.c.b16 %v1517, %v1509
        %v1622 = vpack.c.b16 %v1518, %v1510
        %v1623 = vpack.c.b16 %v1519, %v1511
        %v1624 = vpack.c.b16 %v1528, %v1520
        %v1625 = vpack.c.b16 %v1529, %v1521
        %v1626 = vpack.c.b16 %v1530, %v1522
        %v1627 = vpack.c.b16 %v1531, %v1523
        %v1628 = vpack.c.b16 %v1532, %v1524
        %v1629 = vpack.c.b16 %v1533, %v1525
        %v1630 = vpack.c.b16 %v1534, %v1526
        %v1631 = vpack.c.b16 %v1535, %v1527
        %v1632 = vpack.c.b16 %v1544, %v1536
        %v1633 = vpack.c.b16 %v1545, %v1537
        %v1634 = vpack.c.b16 %v1546, %v1538
        %v1635 = vpack.c.b16 %v1547, %v1539
        %v1636 = vpack.c.b16 %v1548, %v1540
        %v1637 = vpack.c.b16 %v1549, %v1541
        %v1638 = vpack.c.b16 %v1550, %v1542
        %v1639 = vpack.c.b16 %v1551, %v1543
        %v1640 = vpack.c.b16 %v1560, %v1552
        %v1641 = vpack.c.b16 %v1561, %v1553
        %v1642 = vpack.c.b16 %v1562, %v1554
        %v1643 = vpack.c.b16 %v1563, %v1555
        %v1644 = vpack.c.b16 %v1564, %v1556
        %v1645 = vpack.c.b16 %v1565, %v1557
        %v1646 = vpack.c.b16 %v1566, %v1558
        %v1647 = vpack.c.b16 %v1567, %v1559
        %v1648 = vpack.c.b16 %v1576, %v1568
        %v1649 = vpack.c.b16 %v1577, %v1569
        %v1650 = vpack.c.b16 %v1578, %v1570
        %v1651 = vpack.c.b16 %v1579, %v1571
        %v1652 = vpack.c.b16 %v1580, %v1572
        %v1653 = vpack.c.b16 %v1581, %v1573
        %v1654 = vpack.c.b16 %v1582, %v1574
        %v1655 = vpack.c.b16 %v1583, %v1575
        %v1656 = vpack.c.b16 %v1592, %v1584
        %v1657 = vpack.c.b16 %v1593, %v1585
        %v1658 = vpack.c.b16 %v1594, %v1586
        %v1659 = vpack.c.b16 %v1595, %v1587
        %v1660 = vpack.c.b16 %v1596, %v1588
        %v1661 = vpack.c.b16 %v1597, %v1589
        %v1662 = vpack.c.b16 %v1598, %v1590
        %v1663 = vpack.c.b16 %v1599, %v1591
        %1728 = vmatpush.bf16.msra.mxu0 %v1656
        %1729 = vmatpush.bf16.msra.mxu0 %v1648
        %1730 = vmatpush.bf16.msra.mxu0 %v1640
        %1731 = vmatpush.bf16.msra.mxu0 %v1632
        %1732 = vmatpush.bf16.msra.mxu0 %v1624
        %1733 = vmatpush.bf16.msra.mxu0 %v1616
        %1734 = vmatpush.bf16.msra.mxu0 %v1608
        %1735 = vmatpush.bf16.msra.mxu0 %v1600
        %1736 = vmatmul.bf16.gmra.mxu0 %v1325
        %v1737 = vpop.f32.mrf.mxu0
        %v1738 = vadd.f32 %v1392, %v1737
        %v1739 = vpop.f32.mrf.mxu0
        %1740 = vdwg.mxu0
        %1741 = vmatpush.bf16.msra.mxu0 %v1657
        %1742 = vmatpush.bf16.msra.mxu0 %v1649
        %1743 = vmatpush.bf16.msra.mxu0 %v1641
        %1744 = vmatpush.bf16.msra.mxu0 %v1633
        %1745 = vmatpush.bf16.msra.mxu0 %v1625
        %1746 = vmatpush.bf16.msra.mxu0 %v1617
        %1747 = vmatpush.bf16.msra.mxu0 %v1609
        %1748 = vmatpush.bf16.msra.mxu0 %v1601
        %1749 = vmatmul.bf16.gmra.mxu0 %v1325
        %v1750 = vpop.f32.mrf.mxu0
        %v1751 = vadd.f32 %v1393, %v1750
        %v1752 = vpop.f32.mrf.mxu0
        %1753 = vdwg.mxu0
        %1754 = vmatpush.bf16.msra.mxu0 %v1658
        %1755 = vmatpush.bf16.msra.mxu0 %v1650
        %1756 = vmatpush.bf16.msra.mxu0 %v1642
        %1757 = vmatpush.bf16.msra.mxu0 %v1634
        %1758 = vmatpush.bf16.msra.mxu0 %v1626
        %1759 = vmatpush.bf16.msra.mxu0 %v1618
        %1760 = vmatpush.bf16.msra.mxu0 %v1610
        %1761 = vmatpush.bf16.msra.mxu0 %v1602
        %1762 = vmatmul.bf16.gmra.mxu0 %v1325
        %v1763 = vpop.f32.mrf.mxu0
        %v1764 = vadd.f32 %v1394, %v1763
        %v1765 = vpop.f32.mrf.mxu0
        %1766 = vdwg.mxu0
        %1767 = vmatpush.bf16.msra.mxu0 %v1659
        %1768 = vmatpush.bf16.msra.mxu0 %v1651
        %1769 = vmatpush.bf16.msra.mxu0 %v1643
        %1770 = vmatpush.bf16.msra.mxu0 %v1635
        %1771 = vmatpush.bf16.msra.mxu0 %v1627
        %1772 = vmatpush.bf16.msra.mxu0 %v1619
        %1773 = vmatpush.bf16.msra.mxu0 %v1611
        %1774 = vmatpush.bf16.msra.mxu0 %v1603
        %1775 = vmatmul.bf16.gmra.mxu0 %v1325
        %v1776 = vpop.f32.mrf.mxu0
        %v1777 = vadd.f32 %v1395, %v1776
        %v1778 = vpop.f32.mrf.mxu0
        %1779 = vdwg.mxu0
        %1780 = vmatpush.bf16.msra.mxu0 %v1660
        %1781 = vmatpush.bf16.msra.mxu0 %v1652
        %1782 = vmatpush.bf16.msra.mxu0 %v1644
        %1783 = vmatpush.bf16.msra.mxu0 %v1636
        %1784 = vmatpush.bf16.msra.mxu0 %v1628
        %1785 = vmatpush.bf16.msra.mxu0 %v1620
        %1786 = vmatpush.bf16.msra.mxu0 %v1612
        %1787 = vmatpush.bf16.msra.mxu0 %v1604
        %1788 = vmatmul.bf16.gmra.mxu0 %v1325
        %v1789 = vpop.f32.mrf.mxu0
        %v1790 = vadd.f32 %v1396, %v1789
        %v1791 = vpop.f32.mrf.mxu0
        %1792 = vdwg.mxu0
        %1793 = vmatpush.bf16.msra.mxu0 %v1661
        %1794 = vmatpush.bf16.msra.mxu0 %v1653
        %1795 = vmatpush.bf16.msra.mxu0 %v1645
        %1796 = vmatpush.bf16.msra.mxu0 %v1637
        %1797 = vmatpush.bf16.msra.mxu0 %v1629
        %1798 = vmatpush.bf16.msra.mxu0 %v1621
        %1799 = vmatpush.bf16.msra.mxu0 %v1613
        %1800 = vmatpush.bf16.msra.mxu0 %v1605
        %1801 = vmatmul.bf16.gmra.mxu0 %v1325
        %v1802 = vpop.f32.mrf.mxu0
        %v1803 = vadd.f32 %v1397, %v1802
        %v1804 = vpop.f32.mrf.mxu0
        %1805 = vdwg.mxu0
        %1806 = vmatpush.bf16.msra.mxu0 %v1662
        %1807 = vmatpush.bf16.msra.mxu0 %v1654
        %1808 = vmatpush.bf16.msra.mxu0 %v1646
        %1809 = vmatpush.bf16.msra.mxu0 %v1638
        %1810 = vmatpush.bf16.msra.mxu0 %v1630
        %1811 = vmatpush.bf16.msra.mxu0 %v1622
        %1812 = vmatpush.bf16.msra.mxu0 %v1614
        %1813 = vmatpush.bf16.msra.mxu0 %v1606
        %1814 = vmatmul.bf16.gmra.mxu0 %v1325
        %v1815 = vpop.f32.mrf.mxu0
        %v1816 = vadd.f32 %v1398, %v1815
        %v1817 = vpop.f32.mrf.mxu0
        %1818 = vdwg.mxu0
        %1819 = vmatpush.bf16.msra.mxu0 %v1663
        %1820 = vmatpush.bf16.msra.mxu0 %v1655
        %1821 = vmatpush.bf16.msra.mxu0 %v1647
        %1822 = vmatpush.bf16.msra.mxu0 %v1639
        %1823 = vmatpush.bf16.msra.mxu0 %v1631
        %1824 = vmatpush.bf16.msra.mxu0 %v1623
        %1825 = vmatpush.bf16.msra.mxu0 %v1615
        %1826 = vmatpush.bf16.msra.mxu0 %v1607
        %1827 = vmatmul.bf16.gmra.mxu0 %v1325
        %v1828 = vpop.f32.mrf.mxu0
        %v1829 = vadd.f32 %v1399, %v1828
        %v1830 = vpop.f32.mrf.mxu0
        %1831 = vdwg.mxu0
        %v1832 = vmax.f32 %v1738, 0.0
        %v1833 = vmax.f32 %v1751, 0.0
        %v1834 = vmax.f32 %v1764, 0.0
        %v1835 = vmax.f32 %v1777, 0.0
        %v1836 = vmax.f32 %v1790, 0.0
        %v1837 = vmax.f32 %v1803, 0.0
        %v1838 = vmax.f32 %v1816, 0.0
        %v1839 = vmax.f32 %v1829, 0.0
        %v1840 = vpack.c.bf16 %v1832, %v1832
        %v1841 = vpack.c.bf16 %v1833, %v1833
        %v1842 = vpack.c.bf16 %v1834, %v1834
        %v1843 = vpack.c.bf16 %v1835, %v1835
        %v1844 = vpack.c.bf16 %v1836, %v1836
        %v1845 = vpack.c.bf16 %v1837, %v1837
        %v1846 = vpack.c.bf16 %v1838, %v1838
        %v1847 = vpack.c.bf16 %v1839, %v1839
        %v1848 = vld [vmem:[%s609] sm:$0xf]
        %v1849 = vld [vmem:[%s609 + $0x4] sm:$0xf]
        %v1850 = vld [vmem:[%s609 + $0x8] sm:$0xf]
        %v1851 = vld [vmem:[%s609 + $0xc] sm:$0xf]
        %v1852 = vld [vmem:[%s609 + $0x10] sm:$0xf]
        %v1853 = vld [vmem:[%s609 + $0x14] sm:$0xf]
        %v1854 = vld [vmem:[%s609 + $0x18] sm:$0xf]
        %v1855 = vld [vmem:[%s609 + $0x1c] sm:$0xf]
        %v1856 = vld [vmem:[%s609 + $0x20] sm:$0xf]
        %v1857 = vld [vmem:[%s609 + $0x24] sm:$0xf]
        %v1858 = vld [vmem:[%s609 + $0x28] sm:$0xf]
        %v1859 = vld [vmem:[%s609 + $0x2c] sm:$0xf]
        %v1860 = vld [vmem:[%s609 + $0x30] sm:$0xf]
        %v1861 = vld [vmem:[%s609 + $0x34] sm:$0xf]
        %v1862 = vld [vmem:[%s609 + $0x38] sm:$0xf]
        %v1863 = vld [vmem:[%s609 + $0x3c] sm:$0xf]
        %v1864 = vld [vmem:[%s609 + $0x40] sm:$0xf]
        %v1865 = vld [vmem:[%s609 + $0x44] sm:$0xf]
        %v1866 = vld [vmem:[%s609 + $0x48] sm:$0xf]
        %v1867 = vld [vmem:[%s609 + $0x4c] sm:$0xf]
        %v1868 = vld [vmem:[%s609 + $0x50] sm:$0xf]
        %v1869 = vld [vmem:[%s609 + $0x54] sm:$0xf]
        %v1870 = vld [vmem:[%s609 + $0x58] sm:$0xf]
        %v1871 = vld [vmem:[%s609 + $0x5c] sm:$0xf]
        %v1872 = vld [vmem:[%s609 + $0x60] sm:$0xf]
        %v1873 = vld [vmem:[%s609 + $0x64] sm:$0xf]
        %v1874 = vld [vmem:[%s609 + $0x68] sm:$0xf]
        %v1875 = vld [vmem:[%s609 + $0x6c] sm:$0xf]
        %v1876 = vld [vmem:[%s609 + $0x70] sm:$0xf]
        %v1877 = vld [vmem:[%s609 + $0x74] sm:$0xf]
        %v1878 = vld [vmem:[%s609 + $0x78] sm:$0xf]
        %v1879 = vld [vmem:[%s609 + $0x7c] sm:$0xf]
        %v1880 = vld [vmem:[%s609 + $0x80] sm:$0xf]
        %v1881 = vld [vmem:[%s609 + $0x84] sm:$0xf]
        %v1882 = vld [vmem:[%s609 + $0x88] sm:$0xf]
        %v1883 = vld [vmem:[%s609 + $0x8c] sm:$0xf]
        %v1884 = vld [vmem:[%s609 + $0x90] sm:$0xf]
        %v1885 = vld [vmem:[%s609 + $0x94] sm:$0xf]
        %v1886 = vld [vmem:[%s609 + $0x98] sm:$0xf]
        %v1887 = vld [vmem:[%s609 + $0x9c] sm:$0xf]
        %v1888 = vld [vmem:[%s609 + $0xa0] sm:$0xf]
        %v1889 = vld [vmem:[%s609 + $0xa4] sm:$0xf]
        %v1890 = vld [vmem:[%s609 + $0xa8] sm:$0xf]
        %v1891 = vld [vmem:[%s609 + $0xac] sm:$0xf]
        %v1892 = vld [vmem:[%s609 + $0xb0] sm:$0xf]
        %v1893 = vld [vmem:[%s609 + $0xb4] sm:$0xf]
        %v1894 = vld [vmem:[%s609 + $0xb8] sm:$0xf]
        %v1895 = vld [vmem:[%s609 + $0xbc] sm:$0xf]
        %v1896 = vld [vmem:[%s609 + $0xc0] sm:$0xf]
        %v1897 = vld [vmem:[%s609 + $0xc4] sm:$0xf]
        %v1898 = vld [vmem:[%s609 + $0xc8] sm:$0xf]
        %v1899 = vld [vmem:[%s609 + $0xcc] sm:$0xf]
        %v1900 = vld [vmem:[%s609 + $0xd0] sm:$0xf]
        %v1901 = vld [vmem:[%s609 + $0xd4] sm:$0xf]
        %v1902 = vld [vmem:[%s609 + $0xd8] sm:$0xf]
        %v1903 = vld [vmem:[%s609 + $0xdc] sm:$0xf]
        %v1904 = vld [vmem:[%s609 + $0xe0] sm:$0xf]
        %v1905 = vld [vmem:[%s609 + $0xe4] sm:$0xf]
        %v1906 = vld [vmem:[%s609 + $0xe8] sm:$0xf]
        %v1907 = vld [vmem:[%s609 + $0xec] sm:$0xf]
        %v1908 = vld [vmem:[%s609 + $0xf0] sm:$0xf]
        %v1909 = vld [vmem:[%s609 + $0xf4] sm:$0xf]
        %v1910 = vld [vmem:[%s609 + $0xf8] sm:$0xf]
        %v1911 = vld [vmem:[%s609 + $0xfc] sm:$0xf]
        %v1912 = vld [vmem:[%s609 + $0x100] sm:$0xf]
        %v1913 = vld [vmem:[%s609 + $0x104] sm:$0xf]
        %v1914 = vld [vmem:[%s609 + $0x108] sm:$0xf]
        %v1915 = vld [vmem:[%s609 + $0x10c] sm:$0xf]
        %v1916 = vld [vmem:[%s609 + $0x110] sm:$0xf]
        %v1917 = vld [vmem:[%s609 + $0x114] sm:$0xf]
        %v1918 = vld [vmem:[%s609 + $0x118] sm:$0xf]
        %v1919 = vld [vmem:[%s609 + $0x11c] sm:$0xf]
        %v1920 = vld [vmem:[%s609 + $0x120] sm:$0xf]
        %v1921 = vld [vmem:[%s609 + $0x124] sm:$0xf]
        %v1922 = vld [vmem:[%s609 + $0x128] sm:$0xf]
        %v1923 = vld [vmem:[%s609 + $0x12c] sm:$0xf]
        %v1924 = vld [vmem:[%s609 + $0x130] sm:$0xf]
        %v1925 = vld [vmem:[%s609 + $0x134] sm:$0xf]
        %v1926 = vld [vmem:[%s609 + $0x138] sm:$0xf]
        %v1927 = vld [vmem:[%s609 + $0x13c] sm:$0xf]
        %v1928 = vld [vmem:[%s609 + $0x140] sm:$0xf]
        %v1929 = vld [vmem:[%s609 + $0x144] sm:$0xf]
        %v1930 = vld [vmem:[%s609 + $0x148] sm:$0xf]
        %v1931 = vld [vmem:[%s609 + $0x14c] sm:$0xf]
        %v1932 = vld [vmem:[%s609 + $0x150] sm:$0xf]
        %v1933 = vld [vmem:[%s609 + $0x154] sm:$0xf]
        %v1934 = vld [vmem:[%s609 + $0x158] sm:$0xf]
        %v1935 = vld [vmem:[%s609 + $0x15c] sm:$0xf]
        %v1936 = vld [vmem:[%s609 + $0x160] sm:$0xf]
        %v1937 = vld [vmem:[%s609 + $0x164] sm:$0xf]
        %v1938 = vld [vmem:[%s609 + $0x168] sm:$0xf]
        %v1939 = vld [vmem:[%s609 + $0x16c] sm:$0xf]
        %v1940 = vld [vmem:[%s609 + $0x170] sm:$0xf]
        %v1941 = vld [vmem:[%s609 + $0x174] sm:$0xf]
        %v1942 = vld [vmem:[%s609 + $0x178] sm:$0xf]
        %v1943 = vld [vmem:[%s609 + $0x17c] sm:$0xf]
        %v1944 = vld [vmem:[%s609 + $0x180] sm:$0xf]
        %v1945 = vld [vmem:[%s609 + $0x184] sm:$0xf]
        %v1946 = vld [vmem:[%s609 + $0x188] sm:$0xf]
        %v1947 = vld [vmem:[%s609 + $0x18c] sm:$0xf]
        %v1948 = vld [vmem:[%s609 + $0x190] sm:$0xf]
        %v1949 = vld [vmem:[%s609 + $0x194] sm:$0xf]
        %v1950 = vld [vmem:[%s609 + $0x198] sm:$0xf]
        %v1951 = vld [vmem:[%s609 + $0x19c] sm:$0xf]
        %v1952 = vld [vmem:[%s609 + $0x1a0] sm:$0xf]
        %v1953 = vld [vmem:[%s609 + $0x1a4] sm:$0xf]
        %v1954 = vld [vmem:[%s609 + $0x1a8] sm:$0xf]
        %v1955 = vld [vmem:[%s609 + $0x1ac] sm:$0xf]
        %v1956 = vld [vmem:[%s609 + $0x1b0] sm:$0xf]
        %v1957 = vld [vmem:[%s609 + $0x1b4] sm:$0xf]
        %v1958 = vld [vmem:[%s609 + $0x1b8] sm:$0xf]
        %v1959 = vld [vmem:[%s609 + $0x1bc] sm:$0xf]
        %v1960 = vld [vmem:[%s609 + $0x1c0] sm:$0xf]
        %v1961 = vld [vmem:[%s609 + $0x1c4] sm:$0xf]
        %v1962 = vld [vmem:[%s609 + $0x1c8] sm:$0xf]
        %v1963 = vld [vmem:[%s609 + $0x1cc] sm:$0xf]
        %v1964 = vld [vmem:[%s609 + $0x1d0] sm:$0xf]
        %v1965 = vld [vmem:[%s609 + $0x1d4] sm:$0xf]
        %v1966 = vld [vmem:[%s609 + $0x1d8] sm:$0xf]
        %v1967 = vld [vmem:[%s609 + $0x1dc] sm:$0xf]
        %v1968 = vld [vmem:[%s609 + $0x1e0] sm:$0xf]
        %v1969 = vld [vmem:[%s609 + $0x1e4] sm:$0xf]
        %v1970 = vld [vmem:[%s609 + $0x1e8] sm:$0xf]
        %v1971 = vld [vmem:[%s609 + $0x1ec] sm:$0xf]
        %v1972 = vld [vmem:[%s609 + $0x1f0] sm:$0xf]
        %v1973 = vld [vmem:[%s609 + $0x1f4] sm:$0xf]
        %v1974 = vld [vmem:[%s609 + $0x1f8] sm:$0xf]
        %v1975 = vld [vmem:[%s609 + $0x1fc] sm:$0xf]
        %v1976 = vld [vmem:[%s714] sm:$0x1]
        %v1978 = vperm.slane %v1976, 0
        %v2108 = vunpack.c.l.b16 %v1848
        %v2109 = vunpack.c.l.b16 %v1849
        %v2110 = vunpack.c.l.b16 %v1850
        %v2111 = vunpack.c.l.b16 %v1851
        %v2112 = vunpack.c.l.b16 %v1852
        %v2113 = vunpack.c.l.b16 %v1853
        %v2114 = vunpack.c.l.b16 %v1854
        %v2115 = vunpack.c.l.b16 %v1855
        %v2116 = vunpack.c.l.b16 %v1856
        %v2117 = vunpack.c.l.b16 %v1857
        %v2118 = vunpack.c.l.b16 %v1858
        %v2119 = vunpack.c.l.b16 %v1859
        %v2120 = vunpack.c.l.b16 %v1860
        %v2121 = vunpack.c.l.b16 %v1861
        %v2122 = vunpack.c.l.b16 %v1862
        %v2123 = vunpack.c.l.b16 %v1863
        %v2124 = vunpack.c.l.b16 %v1864
        %v2125 = vunpack.c.l.b16 %v1865
        %v2126 = vunpack.c.l.b16 %v1866
        %v2127 = vunpack.c.l.b16 %v1867
        %v2128 = vunpack.c.l.b16 %v1868
        %v2129 = vunpack.c.l.b16 %v1869
        %v2130 = vunpack.c.l.b16 %v1870
        %v2131 = vunpack.c.l.b16 %v1871
        %v2132 = vunpack.c.l.b16 %v1872
        %v2133 = vunpack.c.l.b16 %v1873
        %v2134 = vunpack.c.l.b16 %v1874
        %v2135 = vunpack.c.l.b16 %v1875
        %v2136 = vunpack.c.l.b16 %v1876
        %v2137 = vunpack.c.l.b16 %v1877
        %v2138 = vunpack.c.l.b16 %v1878
        %v2139 = vunpack.c.l.b16 %v1879
        %v2140 = vunpack.c.l.b16 %v1880
        %v2141 = vunpack.c.l.b16 %v1881
        %v2142 = vunpack.c.l.b16 %v1882
        %v2143 = vunpack.c.l.b16 %v1883
        %v2144 = vunpack.c.l.b16 %v1884
        %v2145 = vunpack.c.l.b16 %v1885
        %v2146 = vunpack.c.l.b16 %v1886
        %v2147 = vunpack.c.l.b16 %v1887
        %v2148 = vunpack.c.l.b16 %v1888
        %v2149 = vunpack.c.l.b16 %v1889
        %v2150 = vunpack.c.l.b16 %v1890
        %v2151 = vunpack.c.l.b16 %v1891
        %v2152 = vunpack.c.l.b16 %v1892
        %v2153 = vunpack.c.l.b16 %v1893
        %v2154 = vunpack.c.l.b16 %v1894
        %v2155 = vunpack.c.l.b16 %v1895
        %v2156 = vunpack.c.l.b16 %v1896
        %v2157 = vunpack.c.l.b16 %v1897
        %v2158 = vunpack.c.l.b16 %v1898
        %v2159 = vunpack.c.l.b16 %v1899
        %v2160 = vunpack.c.l.b16 %v1900
        %v2161 = vunpack.c.l.b16 %v1901
        %v2162 = vunpack.c.l.b16 %v1902
        %v2163 = vunpack.c.l.b16 %v1903
        %v2164 = vunpack.c.l.b16 %v1904
        %v2165 = vunpack.c.l.b16 %v1905
        %v2166 = vunpack.c.l.b16 %v1906
        %v2167 = vunpack.c.l.b16 %v1907
        %v2168 = vunpack.c.l.b16 %v1908
        %v2169 = vunpack.c.l.b16 %v1909
        %v2170 = vunpack.c.l.b16 %v1910
        %v2171 = vunpack.c.l.b16 %v1911
        %v2172 = vunpack.c.l.b16 %v1912
        %v2173 = vunpack.c.l.b16 %v1913
        %v2174 = vunpack.c.l.b16 %v1914
        %v2175 = vunpack.c.l.b16 %v1915
        %v2176 = vunpack.c.l.b16 %v1916
        %v2177 = vunpack.c.l.b16 %v1917
        %v2178 = vunpack.c.l.b16 %v1918
        %v2179 = vunpack.c.l.b16 %v1919
        %v2180 = vunpack.c.l.b16 %v1920
        %v2181 = vunpack.c.l.b16 %v1921
        %v2182 = vunpack.c.l.b16 %v1922
        %v2183 = vunpack.c.l.b16 %v1923
        %v2184 = vunpack.c.l.b16 %v1924
        %v2185 = vunpack.c.l.b16 %v1925
        %v2186 = vunpack.c.l.b16 %v1926
        %v2187 = vunpack.c.l.b16 %v1927
        %v2188 = vunpack.c.l.b16 %v1928
        %v2189 = vunpack.c.l.b16 %v1929
        %v2190 = vunpack.c.l.b16 %v1930
        %v2191 = vunpack.c.l.b16 %v1931
        %v2192 = vunpack.c.l.b16 %v1932
        %v2193 = vunpack.c.l.b16 %v1933
        %v2194 = vunpack.c.l.b16 %v1934
        %v2195 = vunpack.c.l.b16 %v1935
        %v2196 = vunpack.c.l.b16 %v1936
        %v2197 = vunpack.c.l.b16 %v1937
        %v2198 = vunpack.c.l.b16 %v1938
        %v2199 = vunpack.c.l.b16 %v1939
        %v2200 = vunpack.c.l.b16 %v1940
        %v2201 = vunpack.c.l.b16 %v1941
        %v2202 = vunpack.c.l.b16 %v1942
        %v2203 = vunpack.c.l.b16 %v1943
        %v2204 = vunpack.c.l.b16 %v1944
        %v2205 = vunpack.c.l.b16 %v1945
        %v2206 = vunpack.c.l.b16 %v1946
        %v2207 = vunpack.c.l.b16 %v1947
        %v2208 = vunpack.c.l.b16 %v1948
        %v2209 = vunpack.c.l.b16 %v1949
        %v2210 = vunpack.c.l.b16 %v1950
        %v2211 = vunpack.c.l.b16 %v1951
        %v2212 = vunpack.c.l.b16 %v1952
        %v2213 = vunpack.c.l.b16 %v1953
        %v2214 = vunpack.c.l.b16 %v1954
        %v2215 = vunpack.c.l.b16 %v1955
        %v2216 = vunpack.c.l.b16 %v1956
        %v2217 = vunpack.c.l.b16 %v1957
        %v2218 = vunpack.c.l.b16 %v1958
        %v2219 = vunpack.c.l.b16 %v1959
        %v2220 = vunpack.c.l.b16 %v1960
        %v2221 = vunpack.c.l.b16 %v1961
        %v2222 = vunpack.c.l.b16 %v1962
        %v2223 = vunpack.c.l.b16 %v1963
        %v2224 = vunpack.c.l.b16 %v1964
        %v2225 = vunpack.c.l.b16 %v1965
        %v2226 = vunpack.c.l.b16 %v1966
        %v2227 = vunpack.c.l.b16 %v1967
        %v2228 = vunpack.c.l.b16 %v1968
        %v2229 = vunpack.c.l.b16 %v1969
        %v2230 = vunpack.c.l.b16 %v1970
        %v2231 = vunpack.c.l.b16 %v1971
        %v2232 = vunpack.c.l.b16 %v1972
        %v2233 = vunpack.c.l.b16 %v1973
        %v2234 = vunpack.c.l.b16 %v1974
        %v2235 = vunpack.c.l.b16 %v1975
        %v2236 = vpack.c.b16 %v2109, %v2108
        %v2237 = vpack.c.b16 %v2111, %v2110
        %v2238 = vpack.c.b16 %v2113, %v2112
        %v2239 = vpack.c.b16 %v2115, %v2114
        %v2240 = vpack.c.b16 %v2117, %v2116
        %v2241 = vpack.c.b16 %v2119, %v2118
        %v2242 = vpack.c.b16 %v2121, %v2120
        %v2243 = vpack.c.b16 %v2123, %v2122
        %v2244 = vpack.c.b16 %v2125, %v2124
        %v2245 = vpack.c.b16 %v2127, %v2126
        %v2246 = vpack.c.b16 %v2129, %v2128
        %v2247 = vpack.c.b16 %v2131, %v2130
        %v2248 = vpack.c.b16 %v2133, %v2132
        %v2249 = vpack.c.b16 %v2135, %v2134
        %v2250 = vpack.c.b16 %v2137, %v2136
        %v2251 = vpack.c.b16 %v2139, %v2138
        %v2252 = vpack.c.b16 %v2141, %v2140
        %v2253 = vpack.c.b16 %v2143, %v2142
        %v2254 = vpack.c.b16 %v2145, %v2144
        %v2255 = vpack.c.b16 %v2147, %v2146
        %v2256 = vpack.c.b16 %v2149, %v2148
        %v2257 = vpack.c.b16 %v2151, %v2150
        %v2258 = vpack.c.b16 %v2153, %v2152
        %v2259 = vpack.c.b16 %v2155, %v2154
        %v2260 = vpack.c.b16 %v2157, %v2156
        %v2261 = vpack.c.b16 %v2159, %v2158
        %v2262 = vpack.c.b16 %v2161, %v2160
        %v2263 = vpack.c.b16 %v2163, %v2162
        %v2264 = vpack.c.b16 %v2165, %v2164
        %v2265 = vpack.c.b16 %v2167, %v2166
        %v2266 = vpack.c.b16 %v2169, %v2168
        %v2267 = vpack.c.b16 %v2171, %v2170
        %v2268 = vpack.c.b16 %v2173, %v2172
        %v2269 = vpack.c.b16 %v2175, %v2174
        %v2270 = vpack.c.b16 %v2177, %v2176
        %v2271 = vpack.c.b16 %v2179, %v2178
        %v2272 = vpack.c.b16 %v2181, %v2180
        %v2273 = vpack.c.b16 %v2183, %v2182
        %v2274 = vpack.c.b16 %v2185, %v2184
        %v2275 = vpack.c.b16 %v2187, %v2186
        %v2276 = vpack.c.b16 %v2189, %v2188
        %v2277 = vpack.c.b16 %v2191, %v2190
        %v2278 = vpack.c.b16 %v2193, %v2192
        %v2279 = vpack.c.b16 %v2195, %v2194
        %v2280 = vpack.c.b16 %v2197, %v2196
        %v2281 = vpack.c.b16 %v2199, %v2198
        %v2282 = vpack.c.b16 %v2201, %v2200
        %v2283 = vpack.c.b16 %v2203, %v2202
        %v2284 = vpack.c.b16 %v2205, %v2204
        %v2285 = vpack.c.b16 %v2207, %v2206
        %v2286 = vpack.c.b16 %v2209, %v2208
        %v2287 = vpack.c.b16 %v2211, %v2210
        %v2288 = vpack.c.b16 %v2213, %v2212
        %v2289 = vpack.c.b16 %v2215, %v2214
        %v2290 = vpack.c.b16 %v2217, %v2216
        %v2291 = vpack.c.b16 %v2219, %v2218
        %v2292 = vpack.c.b16 %v2221, %v2220
        %v2293 = vpack.c.b16 %v2223, %v2222
        %v2294 = vpack.c.b16 %v2225, %v2224
        %v2295 = vpack.c.b16 %v2227, %v2226
        %v2296 = vpack.c.b16 %v2229, %v2228
        %v2297 = vpack.c.b16 %v2231, %v2230
        %v2298 = vpack.c.b16 %v2233, %v2232
        %v2299 = vpack.c.b16 %v2235, %v2234
        %2364 = vmatpush.bf16.msra.mxu0 %v2243
        %2365 = vmatpush.bf16.msra.mxu0 %v2242
        %2366 = vmatpush.bf16.msra.mxu0 %v2241
        %2367 = vmatpush.bf16.msra.mxu0 %v2240
        %2368 = vmatpush.bf16.msra.mxu0 %v2239
        %2369 = vmatpush.bf16.msra.mxu0 %v2238
        %2370 = vmatpush.bf16.msra.mxu0 %v2237
        %2371 = vmatpush.bf16.msra.mxu0 %v2236
        %2372 = vmatmul.bf16.gmra.mxu0 %v1840
        %v2373 = vpop.f32.mrf.mxu0
        %v2374 = vadd.f32 %v1978, %v2373
        %v2375 = vpop.f32.mrf.mxu0
        %2376 = vdwg.mxu0
        %2377 = vmatpush.bf16.msra.mxu0 %v2251
        %2378 = vmatpush.bf16.msra.mxu0 %v2250
        %2379 = vmatpush.bf16.msra.mxu0 %v2249
        %2380 = vmatpush.bf16.msra.mxu0 %v2248
        %2381 = vmatpush.bf16.msra.mxu0 %v2247
        %2382 = vmatpush.bf16.msra.mxu0 %v2246
        %2383 = vmatpush.bf16.msra.mxu0 %v2245
        %2384 = vmatpush.bf16.msra.mxu0 %v2244
        %2385 = vmatmul.bf16.gmra.mxu0 %v1841
        %v2386 = vpop.f32.mrf.mxu0
        %v2387 = vadd.f32 %v2374, %v2386
        %v2388 = vpop.f32.mrf.mxu0
        %2389 = vdwg.mxu0
        %2390 = vmatpush.bf16.msra.mxu0 %v2259
        %2391 = vmatpush.bf16.msra.mxu0 %v2258
        %2392 = vmatpush.bf16.msra.mxu0 %v2257
        %2393 = vmatpush.bf16.msra.mxu0 %v2256
        %2394 = vmatpush.bf16.msra.mxu0 %v2255
        %2395 = vmatpush.bf16.msra.mxu0 %v2254
        %2396 = vmatpush.bf16.msra.mxu0 %v2253
        %2397 = vmatpush.bf16.msra.mxu0 %v2252
        %2398 = vmatmul.bf16.gmra.mxu0 %v1842
        %v2399 = vpop.f32.mrf.mxu0
        %v2400 = vadd.f32 %v2387, %v2399
        %v2401 = vpop.f32.mrf.mxu0
        %2402 = vdwg.mxu0
        %2403 = vmatpush.bf16.msra.mxu0 %v2267
        %2404 = vmatpush.bf16.msra.mxu0 %v2266
        %2405 = vmatpush.bf16.msra.mxu0 %v2265
        %2406 = vmatpush.bf16.msra.mxu0 %v2264
        %2407 = vmatpush.bf16.msra.mxu0 %v2263
        %2408 = vmatpush.bf16.msra.mxu0 %v2262
        %2409 = vmatpush.bf16.msra.mxu0 %v2261
        %2410 = vmatpush.bf16.msra.mxu0 %v2260
        %2411 = vmatmul.bf16.gmra.mxu0 %v1843
        %v2412 = vpop.f32.mrf.mxu0
        %v2413 = vadd.f32 %v2400, %v2412
        %v2414 = vpop.f32.mrf.mxu0
        %2415 = vdwg.mxu0
        %2416 = vmatpush.bf16.msra.mxu0 %v2275
        %2417 = vmatpush.bf16.msra.mxu0 %v2274
        %2418 = vmatpush.bf16.msra.mxu0 %v2273
        %2419 = vmatpush.bf16.msra.mxu0 %v2272
        %2420 = vmatpush.bf16.msra.mxu0 %v2271
        %2421 = vmatpush.bf16.msra.mxu0 %v2270
        %2422 = vmatpush.bf16.msra.mxu0 %v2269
        %2423 = vmatpush.bf16.msra.mxu0 %v2268
        %2424 = vmatmul.bf16.gmra.mxu0 %v1844
        %v2425 = vpop.f32.mrf.mxu0
        %v2426 = vadd.f32 %v2413, %v2425
        %v2427 = vpop.f32.mrf.mxu0
        %2428 = vdwg.mxu0
        %2429 = vmatpush.bf16.msra.mxu0 %v2283
        %2430 = vmatpush.bf16.msra.mxu0 %v2282
        %2431 = vmatpush.bf16.msra.mxu0 %v2281
        %2432 = vmatpush.bf16.msra.mxu0 %v2280
        %2433 = vmatpush.bf16.msra.mxu0 %v2279
        %2434 = vmatpush.bf16.msra.mxu0 %v2278
        %2435 = vmatpush.bf16.msra.mxu0 %v2277
        %2436 = vmatpush.bf16.msra.mxu0 %v2276
        %2437 = vmatmul.bf16.gmra.mxu0 %v1845
        %v2438 = vpop.f32.mrf.mxu0
        %v2439 = vadd.f32 %v2426, %v2438
        %v2440 = vpop.f32.mrf.mxu0
        %2441 = vdwg.mxu0
        %2442 = vmatpush.bf16.msra.mxu0 %v2291
        %2443 = vmatpush.bf16.msra.mxu0 %v2290
        %2444 = vmatpush.bf16.msra.mxu0 %v2289
        %2445 = vmatpush.bf16.msra.mxu0 %v2288
        %2446 = vmatpush.bf16.msra.mxu0 %v2287
        %2447 = vmatpush.bf16.msra.mxu0 %v2286
        %2448 = vmatpush.bf16.msra.mxu0 %v2285
        %2449 = vmatpush.bf16.msra.mxu0 %v2284
        %2450 = vmatmul.bf16.gmra.mxu0 %v1846
        %v2451 = vpop.f32.mrf.mxu0
        %v2452 = vadd.f32 %v2439, %v2451
        %v2453 = vpop.f32.mrf.mxu0
        %2454 = vdwg.mxu0
        %2455 = vmatpush.bf16.msra.mxu0 %v2299
        %2456 = vmatpush.bf16.msra.mxu0 %v2298
        %2457 = vmatpush.bf16.msra.mxu0 %v2297
        %2458 = vmatpush.bf16.msra.mxu0 %v2296
        %2459 = vmatpush.bf16.msra.mxu0 %v2295
        %2460 = vmatpush.bf16.msra.mxu0 %v2294
        %2461 = vmatpush.bf16.msra.mxu0 %v2293
        %2462 = vmatpush.bf16.msra.mxu0 %v2292
        %2463 = vmatmul.bf16.gmra.mxu0 %v1847
        %v2464 = vpop.f32.mrf.mxu0
        %v2465 = vadd.f32 %v2452, %v2464
        %v2466 = vpop.f32.mrf.mxu0
        %2467 = vdwg.mxu0
        %v2468 = vadd.f32 %v1324, %v2465
        %v2469 = vld [vmem:[%s723] sm:$0x1]
        %v2470 = vld [vmem:[%s726] sm:$0x1]
        %2471 = vadd.xlane.f32.xlu0 %v2468
        %v2472 = vpop.xlane.xlu0 %2471
        %v2473 = vmul.f32 %v2472, %v1298
        %v2474 = vsub.f32 %v2468, %v2473
        %v2475 = vmul.f32 %v2474, %v2474
        %2476 = vadd.xlane.f32.xlu0 %v2475
        %v2477 = vpop.xlane.xlu0 %2476
        %v2478 = vmul.f32 %v2477, %v1298
        %v2479 = vadd.f32 %v2478, 1e-05
        %v2480 = vrsqrt.pop %v2479
        %v2481 = vmul.f32 %v2480, %v2479
        %v2482 = vmul.f32 %v2481, %v2480
        %v2483 = vmul.f32 0.5, %v2482
        %v2484 = vsub.f32 1.5, %v2483
        %v2485 = vmul.f32 %v2480, %v2484
        %vm2486 = vweird.f32 %v2479
        %vm2487 = vweird.f32 %v2480
        %vm2488 = vmor %vm2486, %vm2487
        %v2489 = vsel %vm2488, %v2480, %v2485
        %v2490 = vmul.f32 %v2474, %v2489
        %v2492 = vperm.slane %v2469, 0
        %v2494 = vmul.f32 %v2490, %v2492
        %v2496 = vperm.slane %v2470, 0
        %v2498 = vadd.f32 %v2494, %v2496
        %2499 = vst [vmem:[%s730] sm:$0xff] %v2498
        %p2500 = scmp.lt.s32.totalorder %s37, 1
        %s2501 = scalar_select %p2500, %s37, 1
        %s2502 = smul.addr %s2501, 8
        %s2503 = scalar_lea.vmem %s13, %s2502
        // Predicated region
        $region93: #{transformer_encoder_forward.1} parent=71 // pred_check
          %p2504 = pneg %p401
        $region94: #{transformer_encoder_forward.1} parent=71 // pred_check_branch
          %2506 = sbr.rel (%p2504) target = $region96
        $region95: #{transformer_encoder_forward.1} parent=71 // pred_region
          _
        $region96: #{transformer_encoder_forward.1} parent=71 // pred_fallthru
          _
      $region72: #{transformer_encoder_forward.1} parent=5 // pred_fallthru
        _
      %p2507 = scmp.le.s32.totalorder 2, %s28
      // Predicated region
      $region97: #{transformer_encoder_forward.1} parent=5 // pred_check
        %p2508 = pneg %p2507
      $region98: #{transformer_encoder_forward.1} parent=5 // pred_check_branch
        %2510 = sbr.rel (%p2508) target = $region100
      $region99: #{transformer_encoder_forward.1} parent=5 // pred_region
        %s2511 = ssub.s32 %s28, 2
        // Predicated region
        $region101: #{transformer_encoder_forward.1} parent=99 // pred_check
          %p2512 = pneg %p407
        $region102: #{transformer_encoder_forward.1} parent=99 // pred_check_branch
          %2514 = sbr.rel (%p2512) target = $region104
        $region103: #{transformer_encoder_forward.1} parent=99 // pred_region
          %p2515 = scmp.lt.s32.totalorder %s39, 1
          %s2516 = scalar_select %p2515, %s39, 1
          %s2517 = smul.addr %s2516, 8
          %s2518 = scalar_lea.vmem %s13, %s2517
        $region104: #{transformer_encoder_forward.1} parent=99 // pred_fallthru
          _
      $region100: #{transformer_encoder_forward.1} parent=5 // pred_fallthru
        _
    $region6: #{transformer_encoder_forward.1} parent=1 // loop_footer
      %s32 = sadd.s32 1, %s28
    $region7: #{transformer_encoder_forward.1} parent=1 // loop_footer_branch
      %27 = sbr.rel target = $region3
    $region8: #{transformer_encoder_forward.1} parent=1 // loop_exit
      _
    %2519 = vsyncpa [#allocation3], 1
    %s2520 = scalar_lea.sflag [#allocation3], 1
    %2521 = vsyncpa %s2520, 1
    %2522 = vsyncpa [#allocation5], 1
    %s2523 = scalar_lea.sflag [#allocation5], 1
    %2524 = vsyncpa %s2523, 1
    %2525 = vsyncpa [#allocation8], 1
    %s2526 = scalar_lea.sflag [#allocation8], 1
    %2527 = vsyncpa %s2526, 1

</llo_original>
